<compile_context>
chip_gen: v7x
topology: tpu7x:2x2x1
jax: 0.10.0
libtpu: 0.0.40
codegen_flags: <defaults>
</compile_context>

<pallas_src>
import numpy as np
import jax
import jax.numpy as jnp
from jax import lax
from jax.experimental import pallas as pl
from jax.experimental.pallas import tpu as pltpu

IN_CH = 4
SEQ_LEN = 127          # makes flatten after pool3 = 128 * 2 = 256 = fc1 fan-in
OUT_SIZE = 10
BATCH = 2

HIGHEST = jax.lax.Precision.HIGHEST     # only used by the pure-JAX reference

# ----- derived layout constants -----------------------------------------------------
LC1, LP1 = SEQ_LEN + 1, (SEQ_LEN + 1) // 4      # conv1 out len 128, pool1 out 32
LC2, LP2 = LP1 + 1, (LP1 + 1) // 4              # 33, 8
LC3, LP3 = LP2 + 1, (LP2 + 1) // 4              # 9, 2
R0 = BATCH * (SEQ_LEN + 1) + 1                  # 257 shared-pad positions [0,x0,0,x1,0]
R1 = BATCH * (LP1 + 1) + 1                      # 67  rows of h1 (padded layout)
R2 = BATCH * (LP2 + 1) + 1                      # 19  rows of h2 (padded layout)
R3 = LP3 * BATCH                                # 4   rows of h3, row index = l*BATCH + b
OUT_PAD = 128                                   # lane-dense padded output width

# small-constants slab S (bf16): conv packs + conv1-bias column + pool matrices
S_COLS = 256
WC1_ROW = 0          # rows [0:32):  conv1 tap0 cols [0:4), tap1 cols [8:12), b1 column col 16
WC2_ROW = 32         # rows [32:96):  conv2 stacked-tap pack (64, 64)
WC3_ROW = 96         # rows [96:224): conv3 stacked-tap pack (128, 128)
P1_ROW = 224         # rows [224:291): pool1+pad+segment matrix (R1, B*LC1)
P2_ROW = 304         # rows [304:323): pool2 matrix (R2, B*LC2)
P3_ROW = 336         # rows [336:340): pool3 matrix (R3, B*LC3)
S_ROWS = 352

# big-weights slab W (bf16): fc1 pack + fc2 rows (padded to OUT_PAD) -- contraction on lanes
WF1_ROW, WF2_ROW, W_ROWS, W_COLS = 0, 256, 256 + OUT_PAD, 512

# f32 bias row (conv2/conv3/fc1/fc2; conv1 bias lives as a column in the S slab)
B2_OFF, B3_OFF, BF1_OFF, BF2_OFF, BIAS_COLS = 0, 128, 256, 768, 896


# --------------------------------- Pallas kernel ------------------------------------ #
def cnn_kernel(x_ref, sref, wref, bias, o_ref, xs, h1, h2):
    f32, bf16 = jnp.float32, jnp.bfloat16
    B = BATCH

    def mm(a, b):        # A @ B   (single bf16 MXU pass, f32 accumulate)
        return jnp.dot(a.astype(bf16), b.astype(bf16), preferred_element_type=f32)

    def mm_t(a, b):      # A @ B^T without materializing a transpose
        return lax.dot_general(a.astype(bf16), b.astype(bf16),
                               (((1,), (1,)), ((), ())),
                               preferred_element_type=f32)

    # ---- build the shared-zero-pad input layout (channels x positions) in VMEM ------
    # columns: [0 | x_0 | 0 | x_1 | 0]  -> the two conv1 taps are static column windows.
    xs[...] = jnp.zeros_like(xs)
    xs[0:IN_CH, 1:1 + SEQ_LEN] = x_ref[0]
    xs[0:IN_CH, SEQ_LEN + 2:2 * SEQ_LEN + 2] = x_ref[1]

    # ---- conv1 (k=2, pad=1) + ReLU, channels-on-sublanes orientation ----------------
    b1 = sref[WC1_ROW:WC1_ROW + 32, 16:17].astype(f32)                        # (32, 1)
    y = (mm(sref[WC1_ROW:WC1_ROW + 32, 0:IN_CH], xs[0:IN_CH, 0:B * LC1])
         + mm(sref[WC1_ROW:WC1_ROW + 32, 8:8 + IN_CH], xs[0:IN_CH, 1:B * LC1 + 1])
         + b1)
    y = jnp.maximum(y, 0.0)                                                   # (32, 256)
    # AvgPool1d(4) + zero re-pad + batch segmentation + orientation switch: one A @ B^T
    h1[...] = mm_t(sref[P1_ROW:P1_ROW + R1, 0:B * LC1], y)                    # (67, 32)

    # ---- conv2: merged-tap single matmul + ReLU, then fused pool2 --------------------
    a2 = jnp.concatenate([h1[0:B * LC2, :], h1[1:B * LC2 + 1, :]], axis=1)    # (66, 64)
    y = mm(a2, sref[WC2_ROW:WC2_ROW + 64, 0:64]) + bias[:, B2_OFF:B2_OFF + 64]
    y = jnp.maximum(y, 0.0)                                                   # (66, 64)
    h2[...] = mm(sref[P2_ROW:P2_ROW + R2, 0:B * LC2], y)                      # (19, 64)

    # ---- conv3: merged-tap single matmul + ReLU, then fused pool3 (value, no scratch)
    a3 = jnp.concatenate([h2[0:B * LC3, :], h2[1:B * LC3 + 1, :]], axis=1)    # (18, 128)
    y = mm(a3, sref[WC3_ROW:WC3_ROW + 128, 0:128]) + bias[:, B3_OFF:B3_OFF + 128]
    y = jnp.maximum(y, 0.0)                                                   # (18, 128)
    h3 = mm(sref[P3_ROW:P3_ROW + R3, 0:B * LC3], y)                           # (4, 128), row = l*B + b

    # ---- fc1 on the torch channel-major flatten: single K=256 matmul -----------------
    flat = jnp.concatenate([h3[0:B, :], h3[B:2 * B, :]], axis=1)              # (B, 256)
    f = mm(flat, wref[WF1_ROW:WF1_ROW + 256, :]) + bias[:, BF1_OFF:BF1_OFF + 512]
    f = jnp.maximum(f, 0.0)                                                   # (B, 512)
    # TODO(synk): nn.Dropout(p=0.5) is the identity in eval mode; training-mode masking omitted.

    # ---- fc2 (weights stored (out_padded, in): contract along lanes) + sigmoid -------
    logits = mm_t(f, wref[WF2_ROW:WF2_ROW + OUT_PAD, :]) + bias[:, BF2_OFF:BF2_OFF + OUT_PAD]
    z = jnp.exp(-jnp.abs(logits))                                             # stable sigmoid
    o_ref[...] = jnp.where(logits >= 0.0, 1.0 / (1.0 + z), z / (1.0 + z))     # (B, 128) lane-dense


# --------------------------- parameter / operand packing ---------------------------- #
def init_params(key, in_ch=IN_CH, out_size=OUT_SIZE):
    def uni(k, shape, fan_in):
        bound = 1.0 / np.sqrt(fan_in)
        return jax.random.uniform(k, shape, jnp.float32, -bound, bound)

    ks = jax.random.split(key, 10)
    return {
        "w1": uni(ks[0], (32, in_ch, 2), in_ch * 2),
        "b1": uni(ks[1], (32,), in_ch * 2),
        "w2": uni(ks[2], (64, 32, 2), 32 * 2),
        "b2": uni(ks[3], (64,), 32 * 2),
        "w3": uni(ks[4], (128, 64, 2), 64 * 2),
        "b3": uni(ks[5], (128,), 64 * 2),
        "wf1": uni(ks[6], (512, 256), 256),
        "bf1": uni(ks[7], (512,), 256),
        "wf2": uni(ks[8], (out_size, 512), 512),
        "bf2": uni(ks[9], (out_size,), 512),
    }


def pack_operands(p):
    f32 = np.float32
    assert 128 * LP3 == p["wf1"].shape[1], "seq_len inconsistent with fc1 fan-in"

    w1, w2, w3 = (np.asarray(p[k], f32) for k in ("w1", "w2", "w3"))
    wf1, wf2 = np.asarray(p["wf1"], f32), np.asarray(p["wf2"], f32)

    # ---- small-constants slab (bf16) ----
    S = np.zeros((S_ROWS, S_COLS), f32)
    # conv1 weights/bias in (out_ch, in_ch) orientation (conv1 runs channels-on-sublanes)
    S[WC1_ROW:WC1_ROW + 32, 0:IN_CH] = w1[:, :, 0]
    S[WC1_ROW:WC1_ROW + 32, 8:8 + IN_CH] = w1[:, :, 1]
    S[WC1_ROW:WC1_ROW + 32, 16:17] = np.asarray(p["b1"], f32)[:, None]
    # conv2 / conv3 stacked-tap packs, (in_stacked, out): rows [0:C) = tap0, [C:2C) = tap1
    S[WC2_ROW:WC2_ROW + 32, 0:64] = w2[:, :, 0].T
    S[WC2_ROW + 32:WC2_ROW + 64, 0:64] = w2[:, :, 1].T
    S[WC3_ROW:WC3_ROW + 64, 0:128] = w3[:, :, 0].T
    S[WC3_ROW + 64:WC3_ROW + 128, 0:128] = w3[:, :, 1].T

    # pool matrices: AvgPool1d(4) + zero re-pad + per-batch segmentation in one left-multiply
    def fill_pool(row0, lc, lp, out_row):
        for b in range(BATCH):
            for j in range(lp):
                for r in range(4):
                    S[row0 + out_row(b, j), b * lc + 4 * j + r] = 0.25

    fill_pool(P1_ROW, LC1, LP1, lambda b, j: 1 + b * (LP1 + 1) + j)   # -> padded h1 rows
    fill_pool(P2_ROW, LC2, LP2, lambda b, j: 1 + b * (LP2 + 1) + j)   # -> padded h2 rows
    fill_pool(P3_ROW, LC3, LP3, lambda b, j: j * BATCH + b)           # -> h3 row = l*B + b

    # ---- big-weights slab (bf16) ----
    W = np.zeros((W_ROWS, W_COLS), f32)
    wf1r = wf1.reshape(512, 128, LP3)       # torch .view flatten: flat[2c + l] = h[c, l]
    W[WF1_ROW:WF1_ROW + 128, :] = wf1r[:, :, 0].T
    W[WF1_ROW + 128:WF1_ROW + 256, :] = wf1r[:, :, 1].T
    W[WF2_ROW:WF2_ROW + OUT_SIZE, :] = wf2  # (out, in) rows, zero-padded to OUT_PAD rows

    # ---- f32 bias row ----
    bias = np.zeros((1, BIAS_COLS), f32)
    bias[0, B2_OFF:B2_OFF + 64] = np.asarray(p["b2"])
    bias[0, B3_OFF:B3_OFF + 128] = np.asarray(p["b3"])
    bias[0, BF1_OFF:BF1_OFF + 512] = np.asarray(p["bf1"])
    bias[0, BF2_OFF:BF2_OFF + OUT_SIZE] = np.asarray(p["bf2"])

    return (jnp.asarray(S, jnp.bfloat16),
            jnp.asarray(W, jnp.bfloat16),
            jnp.asarray(bias, jnp.float32))


# ------------------------------------ wrapper ---------------------------------------- #
@jax.jit
def cnn_forward(x, operands):
    assert x.shape == (BATCH, IN_CH, SEQ_LEN)
    sslab, wslab, bias = operands
    vmem = pltpu.MemorySpace.VMEM
    out = pl.pallas_call(
        cnn_kernel,
        out_shape=jax.ShapeDtypeStruct((BATCH, OUT_PAD), jnp.float32),
        in_specs=[pl.BlockSpec(memory_space=vmem)] * 4,
        out_specs=pl.BlockSpec(memory_space=vmem),
        scratch_shapes=[pltpu.VMEM((IN_CH, R0), jnp.float32),   # shared-zero-pad input
                        pltpu.VMEM((R1, 32), jnp.float32),      # h1 (padded layout)
                        pltpu.VMEM((R2, 64), jnp.float32)],     # h2 (padded layout)
    )(x, sslab, wslab, bias)
    return out[:, :OUT_SIZE]


# ------------------------------- pure-JAX reference ---------------------------------- #
def torch_ref(x, p):
    def conv1d(h, w, b):
        L = h.shape[-1]
        hp = jnp.pad(h, ((0, 0), (0, 0), (1, 1)))
        return (jnp.einsum("oi,bil->bol", w[:, :, 0], hp[:, :, : L + 1], precision=HIGHEST)
                + jnp.einsum("oi,bil->bol", w[:, :, 1], hp[:, :, 1: L + 2], precision=HIGHEST)
                + b[None, :, None])

    def pool4(h):
        B_, C, L = h.shape
        L4 = (L // 4) * 4
        return h[:, :, :L4].reshape(B_, C, L4 // 4, 4).mean(axis=-1)

    h = pool4(jax.nn.relu(conv1d(x, p["w1"], p["b1"])))
    h = pool4(jax.nn.relu(conv1d(h, p["w2"], p["b2"])))
    h = pool4(jax.nn.relu(conv1d(h, p["w3"], p["b3"])))
    flat = h.reshape(h.shape[0], -1)
    f = jax.nn.relu(jnp.dot(flat, p["wf1"].T, precision=HIGHEST) + p["bf1"])
    logits = jnp.dot(f, p["wf2"].T, precision=HIGHEST) + p["bf2"]
    return jax.nn.sigmoid(logits)


if __name__ == "__main__":
    key = jax.random.PRNGKey(0)
    kx, kp = jax.random.split(key)

    x = jax.random.normal(kx, (BATCH, IN_CH, SEQ_LEN), dtype=jnp.float32)
    params = init_params(kp)
    operands = pack_operands(params)

    y = jax.block_until_ready(cnn_forward(x, operands))
    assert y.shape == (BATCH, OUT_SIZE)

    y_ref = torch_ref(x, params)
    # kernel uses bf16 MXU passes (default precision) + bf16-stored weights; reference is f32-HIGHEST
    np.testing.assert_allclose(np.asarray(y), np.asarray(y_ref), rtol=2e-2, atol=2e-2)

    print("KERNEL_OK")
</pallas_src>

<mosaic_0001>
module attributes {stable_mosaic.version = 11 : i64} {
  func.func @cnn_kernel(%arg0: memref<2x4x127xf32, #tpu.memory_space<vmem>>, %arg1: memref<352x256xbf16, #tpu.memory_space<vmem>>, %arg2: memref<384x512xbf16, #tpu.memory_space<vmem>>, %arg3: memref<1x896xf32, #tpu.memory_space<vmem>>, %arg4: memref<2x128xf32, #tpu.memory_space<vmem>>, %arg5: memref<4x257xf32, #tpu.memory_space<vmem>>, %arg6: memref<67x32xf32, #tpu.memory_space<vmem>>, %arg7: memref<19x64xf32, #tpu.memory_space<vmem>>) attributes {dimension_semantics = [], scalar_prefetch = 0 : i64, scratch_operands = 3 : i64, tpu.core_type = #tpu.core_type<tc>} {
    %cst = arith.constant 0.000000e+00 : f32
    %0 = vector.broadcast %cst : f32 to vector<4x257xf32>
    %c0 = arith.constant 0 : index
    %c0_0 = arith.constant 0 : index
    %1 = vector.load %arg5[%c0, %c0_0] : memref<4x257xf32, #tpu.memory_space<vmem>>, vector<4x257xf32>
    tpu.vector_store %arg5[%c0, %c0_0], %0 {strides = array<i32>} : memref<4x257xf32, #tpu.memory_space<vmem>>, vector<4x257xf32>,
    %c0_1 = arith.constant 0 : index
    %c0_2 = arith.constant 0 : index
    %c0_3 = arith.constant 0 : index
    %2 = vector.load %arg0[%c0_1, %c0_2, %c0_3] : memref<2x4x127xf32, #tpu.memory_space<vmem>>, vector<1x4x127xf32>
    %3 = vector.shape_cast %2 : vector<1x4x127xf32> to vector<4x127xf32>
    %c0_4 = arith.constant 0 : index
    %c1 = arith.constant 1 : index
    %4 = vector.load %arg5[%c0_4, %c1] : memref<4x257xf32, #tpu.memory_space<vmem>>, vector<4x127xf32>
    tpu.vector_store %arg5[%c0_4, %c1], %3 {strides = array<i32>} : memref<4x257xf32, #tpu.memory_space<vmem>>, vector<4x127xf32>,
    %c1_5 = arith.constant 1 : index
    %c0_6 = arith.constant 0 : index
    %c0_7 = arith.constant 0 : index
    %5 = vector.load %arg0[%c1_5, %c0_6, %c0_7] : memref<2x4x127xf32, #tpu.memory_space<vmem>>, vector<1x4x127xf32>
    %6 = vector.shape_cast %5 : vector<1x4x127xf32> to vector<4x127xf32>
    %c0_8 = arith.constant 0 : index
    %c129 = arith.constant 129 : index
    %7 = vector.load %arg5[%c0_8, %c129] : memref<4x257xf32, #tpu.memory_space<vmem>>, vector<4x127xf32>
    tpu.vector_store %arg5[%c0_8, %c129], %6 {strides = array<i32>} : memref<4x257xf32, #tpu.memory_space<vmem>>, vector<4x127xf32>,
    %c0_9 = arith.constant 0 : index
    %c16 = arith.constant 16 : index
    %8 = vector.load %arg1[%c0_9, %c16] : memref<352x256xbf16, #tpu.memory_space<vmem>>, vector<32x1xbf16>
    %9 = arith.extf %8 : vector<32x1xbf16> to vector<32x1xf32>
    %c0_10 = arith.constant 0 : index
    %c0_11 = arith.constant 0 : index
    %10 = vector.load %arg1[%c0_10, %c0_11] : memref<352x256xbf16, #tpu.memory_space<vmem>>, vector<32x4xbf16>
    %c0_12 = arith.constant 0 : index
    %c0_13 = arith.constant 0 : index
    %11 = vector.load %arg5[%c0_12, %c0_13] : memref<4x257xf32, #tpu.memory_space<vmem>>, vector<4x256xf32>
    %12 = arith.truncf %11 : vector<4x256xf32> to vector<4x256xbf16>
    %cst_14 = arith.constant dense<0.000000e+00> : vector<32x256xf32>
    %13 = tpu.matmul %10, %12, %cst_14 {dimension_numbers = #tpu.dot_dimension_numbers<[1], [0], [0], [1], [0, 0, 1, 1], [], []>} : vector<32x4xbf16>, vector<4x256xbf16>, vector<32x256xf32> -> vector<32x256xf32>
    %c0_15 = arith.constant 0 : index
    %c8 = arith.constant 8 : index
    %14 = vector.load %arg1[%c0_15, %c8] : memref<352x256xbf16, #tpu.memory_space<vmem>>, vector<32x4xbf16>
    %c0_16 = arith.constant 0 : index
    %c1_17 = arith.constant 1 : index
    %15 = vector.load %arg5[%c0_16, %c1_17] : memref<4x257xf32, #tpu.memory_space<vmem>>, vector<4x256xf32>
    %16 = arith.truncf %15 : vector<4x256xf32> to vector<4x256xbf16>
    %cst_18 = arith.constant dense<0.000000e+00> : vector<32x256xf32>
    %17 = tpu.matmul %14, %16, %cst_18 {dimension_numbers = #tpu.dot_dimension_numbers<[1], [0], [0], [1], [0, 0, 1, 1], [], []>} : vector<32x4xbf16>, vector<4x256xbf16>, vector<32x256xf32> -> vector<32x256xf32>
    %18 = arith.addf %13, %17 : vector<32x256xf32>
    %19 = vector.broadcast %9 : vector<32x1xf32> to vector<32x256xf32>
    %20 = arith.addf %18, %19 : vector<32x256xf32>
    %cst_19 = arith.constant 0.000000e+00 : f32
    %21 = vector.broadcast %cst_19 : f32 to vector<32x256xf32>
    %22 = arith.maximumf %20, %21 : vector<32x256xf32>
    %c224 = arith.constant 224 : index
    %c0_20 = arith.constant 0 : index
    %23 = vector.load %arg1[%c224, %c0_20] : memref<352x256xbf16, #tpu.memory_space<vmem>>, vector<67x256xbf16>
    %24 = arith.truncf %22 : vector<32x256xf32> to vector<32x256xbf16>
    %cst_21 = arith.constant dense<0.000000e+00> : vector<67x32xf32>
    %25 = tpu.matmul %23, %24, %cst_21 {dimension_numbers = #tpu.dot_dimension_numbers<[1], [1], [0], [0], [0, 0, 1, 0], [], []>} : vector<67x256xbf16>, vector<32x256xbf16>, vector<67x32xf32> -> vector<67x32xf32>
    %c0_22 = arith.constant 0 : index
    %c0_23 = arith.constant 0 : index
    %26 = vector.load %arg6[%c0_22, %c0_23] : memref<67x32xf32, #tpu.memory_space<vmem>>, vector<67x32xf32>
    tpu.vector_store %arg6[%c0_22, %c0_23], %25 {strides = array<i32>} : memref<67x32xf32, #tpu.memory_space<vmem>>, vector<67x32xf32>,
    %c0_24 = arith.constant 0 : index
    %c0_25 = arith.constant 0 : index
    %27 = vector.load %arg6[%c0_24, %c0_25] : memref<67x32xf32, #tpu.memory_space<vmem>>, vector<66x32xf32>
    %c1_26 = arith.constant 1 : index
    %c0_27 = arith.constant 0 : index
    %28 = vector.load %arg6[%c1_26, %c0_27] : memref<67x32xf32, #tpu.memory_space<vmem>>, vector<66x32xf32>
    %29 = tpu.concatenate %27, %28 in 1 : vector<66x32xf32>, vector<66x32xf32> -> vector<66x64xf32>
    %c32 = arith.constant 32 : index
    %c0_28 = arith.constant 0 : index
    %30 = vector.load %arg1[%c32, %c0_28] : memref<352x256xbf16, #tpu.memory_space<vmem>>, vector<64x64xbf16>
    %31 = arith.truncf %29 : vector<66x64xf32> to vector<66x64xbf16>
    %cst_29 = arith.constant dense<0.000000e+00> : vector<66x64xf32>
    %32 = tpu.matmul %31, %30, %cst_29 {dimension_numbers = #tpu.dot_dimension_numbers<[1], [0], [0], [1], [0, 0, 1, 1], [], []>} : vector<66x64xbf16>, vector<64x64xbf16>, vector<66x64xf32> -> vector<66x64xf32>
    %c0_30 = arith.constant 0 : index
    %c0_31 = arith.constant 0 : index
    %33 = vector.load %arg3[%c0_30, %c0_31] : memref<1x896xf32, #tpu.memory_space<vmem>>, vector<1x64xf32>
    %34 = vector.broadcast %33 : vector<1x64xf32> to vector<66x64xf32>
    %35 = arith.addf %32, %34 : vector<66x64xf32>
    %cst_32 = arith.constant 0.000000e+00 : f32
    %36 = vector.broadcast %cst_32 : f32 to vector<66x64xf32>
    %37 = arith.maximumf %35, %36 : vector<66x64xf32>
    %c304 = arith.constant 304 : index
    %c0_33 = arith.constant 0 : index
    %38 = vector.load %arg1[%c304, %c0_33] : memref<352x256xbf16, #tpu.memory_space<vmem>>, vector<19x66xbf16>
    %39 = arith.truncf %37 : vector<66x64xf32> to vector<66x64xbf16>
    %cst_34 = arith.constant dense<0.000000e+00> : vector<19x64xf32>
    %40 = tpu.matmul %38, %39, %cst_34 {dimension_numbers = #tpu.dot_dimension_numbers<[1], [0], [0], [1], [0, 0, 1, 1], [], []>} : vector<19x66xbf16>, vector<66x64xbf16>, vector<19x64xf32> -> vector<19x64xf32>
    %c0_35 = arith.constant 0 : index
    %c0_36 = arith.constant 0 : index
    %41 = vector.load %arg7[%c0_35, %c0_36] : memref<19x64xf32, #tpu.memory_space<vmem>>, vector<19x64xf32>
    tpu.vector_store %arg7[%c0_35, %c0_36], %40 {strides = array<i32>} : memref<19x64xf32, #tpu.memory_space<vmem>>, vector<19x64xf32>,
    %c0_37 = arith.constant 0 : index
    %c0_38 = arith.constant 0 : index
    %42 = vector.load %arg7[%c0_37, %c0_38] : memref<19x64xf32, #tpu.memory_space<vmem>>, vector<18x64xf32>
    %c1_39 = arith.constant 1 : index
    %c0_40 = arith.constant 0 : index
    %43 = vector.load %arg7[%c1_39, %c0_40] : memref<19x64xf32, #tpu.memory_space<vmem>>, vector<18x64xf32>
    %44 = tpu.concatenate %42, %43 in 1 : vector<18x64xf32>, vector<18x64xf32> -> vector<18x128xf32>
    %c96 = arith.constant 96 : index
    %c0_41 = arith.constant 0 : index
    %45 = vector.load %arg1[%c96, %c0_41] : memref<352x256xbf16, #tpu.memory_space<vmem>>, vector<128x128xbf16>
    %46 = arith.truncf %44 : vector<18x128xf32> to vector<18x128xbf16>
    %cst_42 = arith.constant dense<0.000000e+00> : vector<18x128xf32>
    %47 = tpu.matmul %46, %45, %cst_42 {dimension_numbers = #tpu.dot_dimension_numbers<[1], [0], [0], [1], [0, 0, 1, 1], [], []>} : vector<18x128xbf16>, vector<128x128xbf16>, vector<18x128xf32> -> vector<18x128xf32>
    %c0_43 = arith.constant 0 : index
    %c128 = arith.constant 128 : index
    %48 = vector.load %arg3[%c0_43, %c128] : memref<1x896xf32, #tpu.memory_space<vmem>>, vector<1x128xf32>
    %49 = vector.broadcast %48 : vector<1x128xf32> to vector<18x128xf32>
    %50 = arith.addf %47, %49 : vector<18x128xf32>
    %cst_44 = arith.constant 0.000000e+00 : f32
    %51 = vector.broadcast %cst_44 : f32 to vector<18x128xf32>
    %52 = arith.maximumf %50, %51 : vector<18x128xf32>
    %c336 = arith.constant 336 : index
    %c0_45 = arith.constant 0 : index
    %53 = vector.load %arg1[%c336, %c0_45] : memref<352x256xbf16, #tpu.memory_space<vmem>>, vector<4x18xbf16>
    %54 = arith.truncf %52 : vector<18x128xf32> to vector<18x128xbf16>
    %cst_46 = arith.constant dense<0.000000e+00> : vector<4x128xf32>
    %55 = tpu.matmul %53, %54, %cst_46 {dimension_numbers = #tpu.dot_dimension_numbers<[1], [0], [0], [1], [0, 0, 1, 1], [], []>} : vector<4x18xbf16>, vector<18x128xbf16>, vector<4x128xf32> -> vector<4x128xf32>
    %56 = vector.extract_strided_slice %55 {offsets = [0, 0], sizes = [2, 128], strides = [1, 1]} : vector<4x128xf32> to vector<2x128xf32>
    %57 = vector.extract_strided_slice %55 {offsets = [2, 0], sizes = [2, 128], strides = [1, 1]} : vector<4x128xf32> to vector<2x128xf32>
    %58 = tpu.concatenate %56, %57 in 1 : vector<2x128xf32>, vector<2x128xf32> -> vector<2x256xf32>
    %c0_47 = arith.constant 0 : index
    %c0_48 = arith.constant 0 : index
    %59 = vector.load %arg2[%c0_47, %c0_48] : memref<384x512xbf16, #tpu.memory_space<vmem>>, vector<256x512xbf16>
    %60 = arith.truncf %58 : vector<2x256xf32> to vector<2x256xbf16>
    %cst_49 = arith.constant dense<0.000000e+00> : vector<2x512xf32>
    %61 = tpu.matmul %60, %59, %cst_49 {dimension_numbers = #tpu.dot_dimension_numbers<[1], [0], [0], [1], [0, 0, 1, 1], [], []>} : vector<2x256xbf16>, vector<256x512xbf16>, vector<2x512xf32> -> vector<2x512xf32>
    %c0_50 = arith.constant 0 : index
    %c256 = arith.constant 256 : index
    %62 = vector.load %arg3[%c0_50, %c256] : memref<1x896xf32, #tpu.memory_space<vmem>>, vector<1x512xf32>
    %63 = vector.broadcast %62 : vector<1x512xf32> to vector<2x512xf32>
    %64 = arith.addf %61, %63 : vector<2x512xf32>
    %cst_51 = arith.constant 0.000000e+00 : f32
    %65 = vector.broadcast %cst_51 : f32 to vector<2x512xf32>
    %66 = arith.maximumf %64, %65 : vector<2x512xf32>
    %c256_52 = arith.constant 256 : index
    %c0_53 = arith.constant 0 : index
    %67 = vector.load %arg2[%c256_52, %c0_53] : memref<384x512xbf16, #tpu.memory_space<vmem>>, vector<128x512xbf16>
    %68 = arith.truncf %66 : vector<2x512xf32> to vector<2x512xbf16>
    %cst_54 = arith.constant dense<0.000000e+00> : vector<2x128xf32>
    %69 = tpu.matmul %68, %67, %cst_54 {dimension_numbers = #tpu.dot_dimension_numbers<[1], [1], [0], [0], [0, 0, 1, 0], [], []>} : vector<2x512xbf16>, vector<128x512xbf16>, vector<2x128xf32> -> vector<2x128xf32>
    %c0_55 = arith.constant 0 : index
    %c768 = arith.constant 768 : index
    %70 = vector.load %arg3[%c0_55, %c768] : memref<1x896xf32, #tpu.memory_space<vmem>>, vector<1x128xf32>
    %71 = vector.broadcast %70 : vector<1x128xf32> to vector<2x128xf32>
    %72 = arith.addf %69, %71 : vector<2x128xf32>
    %73 = math.absf %72 : vector<2x128xf32>
    %cst_56 = arith.constant 0.000000e+00 : f32
    %74 = vector.broadcast %cst_56 : f32 to vector<2x128xf32>
    %75 = arith.subf %74, %73 : vector<2x128xf32>
    %76 = math.exp %75 : vector<2x128xf32>
    %cst_57 = arith.constant 0.000000e+00 : f32
    %77 = vector.broadcast %cst_57 : f32 to vector<2x128xf32>
    %78 = arith.cmpf oge, %72, %77 : vector<2x128xf32>
    %cst_58 = arith.constant 1.000000e+00 : f32
    %79 = vector.broadcast %cst_58 : f32 to vector<2x128xf32>
    %80 = arith.addf %79, %76 : vector<2x128xf32>
    %cst_59 = arith.constant 1.000000e+00 : f32
    %81 = vector.broadcast %cst_59 : f32 to vector<2x128xf32>
    %82 = arith.divf %81, %80 : vector<2x128xf32>
    %cst_60 = arith.constant 1.000000e+00 : f32
    %83 = vector.broadcast %cst_60 : f32 to vector<2x128xf32>
    %84 = arith.addf %83, %76 : vector<2x128xf32>
    %85 = arith.divf %76, %84 : vector<2x128xf32>
    %86 = arith.select %78, %82, %85 : vector<2x128xi1>, vector<2x128xf32>
    %c0_61 = arith.constant 0 : index
    %c0_62 = arith.constant 0 : index
    %87 = vector.load %arg4[%c0_61, %c0_62] : memref<2x128xf32, #tpu.memory_space<vmem>>, vector<2x128xf32>
    tpu.vector_store %arg4[%c0_61, %c0_62], %86 {strides = array<i32>} : memref<2x128xf32, #tpu.memory_space<vmem>>, vector<2x128xf32>,
    return
  }
}

</mosaic_0001>

<llo_original>
// kernel: cnn_forward.1
$region0: #{cnn_forward.1}
  #allocation0 [shape = 'u32[]', space=smem, size = 0x4, offset = 0x4, fixed_abs, tag = 'smem constant byte address 0x4 - core index']
  #allocation1 [shape = 'u32[144,128]{1,0:T(1,128)}', space=vmem, size = 0x12000, scoped, tag = 'internal scratch']
  #allocation2 [shape = 'f32[4,257]{1,0:T(4,128)}', space=vmem, size = 0x1800, scoped, tag = 'scratch operand']
  #allocation3 [shape = 'f32[67,32]{1,0:T(8,128)}', space=vmem, size = 0x9000, scoped, tag = 'scratch operand']
  #allocation4 [shape = 'f32[19,64]{1,0:T(8,128)}', space=vmem, size = 0x3000, scoped, tag = 'scratch operand']
  %s0 = inlined_call_operand.hbm [shape: f32[2,4,127], index: 0, kind: input, shape index: {}]
  %s1 = inlined_call_operand.hbm [shape: bf16[352,256], index: 1, kind: input, shape index: {}]
  %s2 = inlined_call_operand.hbm [shape: bf16[384,512], index: 2, kind: input, shape index: {}]
  %s3 = inlined_call_operand.vmem [shape: f32[1,896], index: 3, kind: input, shape index: {}]
  %s4 = inlined_call_operand.hbm [shape: f32[2,128], index: 4, kind: output, shape index: {}]
  %s5 = sld [smem:[#allocation0]]
  $region38: #{cnn_forward.1} parent=0
    _
  %s7 = ssub.s32 1, %s5
  %s8 = scalar_select 0, %s7, %s5
  $region1: #{cnn_forward.1} parent=0
    #allocation5 [shape = 'u8[4096]{0}', space=vmem, size = 0x1000, scoped, tag = 'input window, operand 0, single buffered']
    #allocation6 [shape = 's32[1]{0}', space=sflag, size = 0x4, scoped, tag = 'scoped memory for cnn_forward.1']
    #allocation7 [shape = 's32[1]{0}', space=sflag, size = 0x4, scoped, tag = 'scoped memory for cnn_forward.1']
    #allocation8 [shape = 'u8[180224]{0}', space=vmem, size = 0x2c000, scoped, tag = 'input window, operand 1, single buffered']
    #allocation9 [shape = 's32[1]{0}', space=sflag, size = 0x4, scoped, tag = 'scoped memory for cnn_forward.1']
    #allocation10 [shape = 'u8[393216]{0}', space=vmem, size = 0x60000, scoped, tag = 'input window, operand 2, single buffered']
    #allocation11 [shape = 'u8[1024]{0}', space=vmem, size = 0x400, scoped, tag = 'output window, operand 0, single buffered']
    %9 = vsyncpa [#allocation6], 0
    %10 = vsyncpa [#allocation9], 0
    %11 = vsyncpa [#allocation7], 0
    // Predicated region
    $region2: #{cnn_forward.1} parent=1 // pred_check
      _
    $region3: #{cnn_forward.1} parent=1 // pred_check_branch
      %13 = sbr.rel (0) target = $region5
    $region4: #{cnn_forward.1} parent=1 // pred_region
      %s15 = ssub.s32 128, 128
      %16 = vsyncadd [#allocation6], %s15
      %s17 = sshll.u32 [#allocation5], 4
      %s18 = int_to_ptr.vmem [resolvable:$true] %s17
      %23 = dma.hbm_to_vmem [thread:$0]  %s0, 128, %s18, [#allocation6], 64, 64, 4
    $region5: #{cnn_forward.1} parent=1 // pred_fallthru
      _
    // Predicated region
    $region6: #{cnn_forward.1} parent=1 // pred_check
      _
    $region7: #{cnn_forward.1} parent=1 // pred_check_branch
      %25 = sbr.rel (0) target = $region9
    $region8: #{cnn_forward.1} parent=1 // pred_region
      %s27 = ssub.s32 5632, 5632
      %28 = vsyncadd [#allocation9], %s27
      %s29 = sshll.u32 [#allocation8], 4
      %s30 = int_to_ptr.vmem [resolvable:$true] %s29
      %35 = dma.hbm_to_vmem [thread:$0]  %s1, 5632, %s30, [#allocation9], 128, 128, 8
    $region9: #{cnn_forward.1} parent=1 // pred_fallthru
      _
    // Predicated region
    $region10: #{cnn_forward.1} parent=1 // pred_check
      _
    $region11: #{cnn_forward.1} parent=1 // pred_check_branch
      %37 = sbr.rel (0) target = $region13
    $region12: #{cnn_forward.1} parent=1 // pred_region
      %s39 = ssub.s32 12288, 12288
      %40 = vsyncadd [#allocation9], %s39
      %s41 = sshll.u32 [#allocation10], 4
      %s42 = int_to_ptr.vmem [resolvable:$true] %s41
      %47 = dma.hbm_to_vmem [thread:$0]  %s2, 12288, %s42, [#allocation9], 256, 256, 16
    $region13: #{cnn_forward.1} parent=1 // pred_fallthru
      _
    // Predicated region
    $region14: #{cnn_forward.1} parent=1 // pred_check
      _
    $region15: #{cnn_forward.1} parent=1 // pred_check_branch
      %49 = sbr.rel (0) target = $region17
    $region16: #{cnn_forward.1} parent=1 // pred_region
      _
    $region17: #{cnn_forward.1} parent=1 // pred_fallthru
      _
    // Predicated region
    $region18: #{cnn_forward.1} parent=1 // pred_check
      _
    $region19: #{cnn_forward.1} parent=1 // pred_check_branch
      %51 = sbr.rel (0) target = $region21
    $region20: #{cnn_forward.1} parent=1 // pred_region
      %52 = dma.done [#allocation6], 128
    $region21: #{cnn_forward.1} parent=1 // pred_fallthru
      _
    // Predicated region
    $region22: #{cnn_forward.1} parent=1 // pred_check
      _
    $region23: #{cnn_forward.1} parent=1 // pred_check_branch
      %54 = sbr.rel (0) target = $region25
    $region24: #{cnn_forward.1} parent=1 // pred_region
      %55 = dma.done [#allocation9], 5632
    $region25: #{cnn_forward.1} parent=1 // pred_fallthru
      _
    // Predicated region
    $region26: #{cnn_forward.1} parent=1 // pred_check
      _
    $region27: #{cnn_forward.1} parent=1 // pred_check_branch
      %57 = sbr.rel (0) target = $region29
    $region28: #{cnn_forward.1} parent=1 // pred_region
      %58 = dma.done [#allocation9], 12288
    $region29: #{cnn_forward.1} parent=1 // pred_fallthru
      _
    %60 = vst [vmem:[#allocation2] sm:$0xff] 0.0
    %vm61 = vcmask 3072
    %62 = vst.msk [vmem:[#allocation2 + $0x8] sm:$0xf] %vm61, 0.0
    %v63 = vld [vmem:[#allocation5] sm:$0xf]
    %65 = vrot.lane.b32.xlu0 %v63, 1
    %v66 = vpop.permute.xlu0 %65
    %vm68 = vcmask 1043464
    %69 = vst.msk [vmem:[#allocation2] sm:$0xf] %vm68, %v66
    %s70 = scalar_lea.vmem [#allocation5], 4
    %v71 = vld [vmem:[%s70] sm:$0xf]
    %73 = vrot.lane.b32.xlu0 %v71, 1
    %v74 = vpop.permute.xlu0 %73
    %76 = vst.msk [vmem:[#allocation2 + $0x4] sm:$0xf] %vm68, %v74
    %v77 = vld [vmem:[#allocation8] sm:$0xf]
    %v78 = vld [vmem:[#allocation8 + $0x8] sm:$0xf]
    %v79 = vld [vmem:[#allocation8 + $0x10] sm:$0xf]
    %v80 = vld [vmem:[#allocation8 + $0x18] sm:$0xf]
    %v81 = vunpack.c.l.bf16 %v77
    %v82 = vunpack.c.l.bf16 %v78
    %v83 = vunpack.c.l.bf16 %v79
    %v84 = vunpack.c.l.bf16 %v80
    %v85 = vld [vmem:[#allocation2] sm:$0xff]
    %v87 = vcombine.high %v85, %v85
    %v89 = vpack.c.bf16 %v85, %v85
    %v90 = vpack.c.bf16 %v87, %v87
    %v91 = vld [vmem:[#allocation2 + $0x8] sm:$0xf]
    %v92 = vpack.c.bf16 %v91, %v91
    %v97 = vunpack.c.l.b16 %v77
    %v98 = vunpack.c.l.b16 %v78
    %v99 = vunpack.c.l.b16 %v79
    %v100 = vunpack.c.l.b16 %v80
    %v101 = vpack.c.b16 %v98, %v97
    %v102 = vpack.c.b16 %v100, %v99
    %103 = vrot.lane.b32.xlu0 %v101, 120
    %v104 = vpop.permute.xlu0 %103
    %105 = vrot.lane.b32.xlu0 %v102, 120
    %v106 = vpop.permute.xlu0 %105
    %110 = vrot.lane.b32.xlu0 %v89, 127
    %v111 = vpop.permute.xlu0 %110
    %112 = vrot.lane.b32.xlu0 %v90, 127
    %v113 = vpop.permute.xlu0 %112
    %114 = vrot.lane.b32.xlu0 %v92, 127
    %v115 = vpop.permute.xlu0 %114
    %vm116 = vcmask 1039360
    %v117 = vsel %vm116, %v111, %v113
    %v118 = vsel %vm116, %v113, %v115
    %vm119 = vcmask 31744
    %v121 = vsel %vm119, %v104, 0
    %v124 = vsel %vm119, %v106, 0
    %vm126 = vcmask 1041408
    %v128 = vsel %vm126, %v117, 0
    %v131 = vsel %vm126, %v118, 0
    %133 = vmatprep.subr.bf16.mxu0 %v131
    %134 = vmatpush1.bf16.msra.mxu0 %v128
    %135 = vmatprep.subr.bf16.mxu0 0
    %136 = vmatpush1.bf16.msra.mxu0 0
    %137 = vmatprep.subr.bf16.mxu0 0
    %138 = vmatpush1.bf16.msra.mxu0 0
    %139 = vmatprep.subr.bf16.mxu0 0
    %140 = vmatpush1.bf16.msra.mxu0 0
    %141 = vmatprep.subr.bf16.mxu0 0
    %142 = vmatpush1.bf16.msra.mxu0 0
    %143 = vmatprep.subr.bf16.mxu0 0
    %144 = vmatpush1.bf16.msra.mxu0 0
    %145 = vmatprep.subr.bf16.mxu0 0
    %146 = vmatpush1.bf16.msra.mxu0 0
    %147 = vmatprep.subr.bf16.mxu0 0
    %148 = vmatpush1.bf16.msra.mxu0 0
    %149 = vmatprep.subr.bf16.mxu0 0
    %150 = vmatpush1.bf16.msra.mxu0 0
    %151 = vmatprep.subr.bf16.mxu0 0
    %152 = vmatpush1.bf16.msra.mxu0 0
    %153 = vmatprep.subr.bf16.mxu0 0
    %154 = vmatpush1.bf16.msra.mxu0 0
    %155 = vmatprep.subr.bf16.mxu0 0
    %156 = vmatpush1.bf16.msra.mxu0 0
    %157 = vmatprep.subr.bf16.mxu0 0
    %158 = vmatpush1.bf16.msra.mxu0 0
    %159 = vmatprep.subr.bf16.mxu0 0
    %160 = vmatpush1.bf16.msra.mxu0 0
    %161 = vmatprep.subr.bf16.mxu0 0
    %162 = vmatpush1.bf16.msra.mxu0 0
    %163 = vmatprep.subr.bf16.mxu0 0
    %164 = vmatpush1.bf16.msra.mxu0 0
    %165 = vmatprep.mubr.bf16.mxu0 0
    %166 = vmatmul.mubr.bf16.gmra.mrb[0].mxu0 %v121
    %v167 = vpop.f32.mrb[0].mxu0
    %v168 = vadd.f32 0.0, %v167
    %v169 = vpop.f32.mrb[0].mxu0
    %v170 = vadd.f32 0.0, %v169
    %v171 = vpop.f32.mrb[0].mxu0
    %v172 = vadd.f32 0.0, %v171
    %v173 = vpop.f32.mrb[0].mxu0
    %v174 = vadd.f32 0.0, %v173
    %175 = vmatprep.mubr.bf16.mxu0 0
    %176 = vmatmul.mubr.bf16.gmra.mrb[0].mxu0 %v124
    %v177 = vpop.f32.mrb[0].mxu0
    %v178 = vadd.f32 0.0, %v177
    %v179 = vpop.f32.mrb[0].mxu0
    %v180 = vadd.f32 0.0, %v179
    %v181 = vpop.f32.mrb[0].mxu0
    %v182 = vadd.f32 0.0, %v181
    %v183 = vpop.f32.mrb[0].mxu0
    %v184 = vadd.f32 0.0, %v183
    %185 = vdwg.mxu0
    %v187 = vsel %vm119, %v101, 0
    %v190 = vsel %vm119, %v102, 0
    %v193 = vsel %vm126, %v89, 0
    %v196 = vsel %vm126, %v90, 0
    %198 = vmatprep.subr.bf16.mxu0 %v196
    %199 = vmatpush1.bf16.msra.mxu0 %v193
    %200 = vmatprep.subr.bf16.mxu0 0
    %201 = vmatpush1.bf16.msra.mxu0 0
    %202 = vmatprep.subr.bf16.mxu0 0
    %203 = vmatpush1.bf16.msra.mxu0 0
    %204 = vmatprep.subr.bf16.mxu0 0
    %205 = vmatpush1.bf16.msra.mxu0 0
    %206 = vmatprep.subr.bf16.mxu0 0
    %207 = vmatpush1.bf16.msra.mxu0 0
    %208 = vmatprep.subr.bf16.mxu0 0
    %209 = vmatpush1.bf16.msra.mxu0 0
    %210 = vmatprep.subr.bf16.mxu0 0
    %211 = vmatpush1.bf16.msra.mxu0 0
    %212 = vmatprep.subr.bf16.mxu0 0
    %213 = vmatpush1.bf16.msra.mxu0 0
    %214 = vmatprep.subr.bf16.mxu0 0
    %215 = vmatpush1.bf16.msra.mxu0 0
    %216 = vmatprep.subr.bf16.mxu0 0
    %217 = vmatpush1.bf16.msra.mxu0 0
    %218 = vmatprep.subr.bf16.mxu0 0
    %219 = vmatpush1.bf16.msra.mxu0 0
    %220 = vmatprep.subr.bf16.mxu0 0
    %221 = vmatpush1.bf16.msra.mxu0 0
    %222 = vmatprep.subr.bf16.mxu0 0
    %223 = vmatpush1.bf16.msra.mxu0 0
    %224 = vmatprep.subr.bf16.mxu0 0
    %225 = vmatpush1.bf16.msra.mxu0 0
    %226 = vmatprep.subr.bf16.mxu0 0
    %227 = vmatpush1.bf16.msra.mxu0 0
    %228 = vmatprep.subr.bf16.mxu0 0
    %229 = vmatpush1.bf16.msra.mxu0 0
    %230 = vmatprep.mubr.bf16.mxu0 0
    %231 = vmatmul.mubr.bf16.gmra.mrb[0].mxu0 %v187
    %v232 = vpop.f32.mrb[0].mxu0
    %v233 = vadd.f32 %v168, %v232
    %v234 = vpop.f32.mrb[0].mxu0
    %v235 = vadd.f32 %v170, %v234
    %v236 = vpop.f32.mrb[0].mxu0
    %v237 = vadd.f32 %v172, %v236
    %v238 = vpop.f32.mrb[0].mxu0
    %v239 = vadd.f32 %v174, %v238
    %240 = vmatprep.mubr.bf16.mxu0 0
    %241 = vmatmul.mubr.bf16.gmra.mrb[0].mxu0 %v190
    %v242 = vpop.f32.mrb[0].mxu0
    %v243 = vadd.f32 %v178, %v242
    %v244 = vpop.f32.mrb[0].mxu0
    %v245 = vadd.f32 %v180, %v244
    %v246 = vpop.f32.mrb[0].mxu0
    %v247 = vadd.f32 %v182, %v246
    %v248 = vpop.f32.mrb[0].mxu0
    %v249 = vadd.f32 %v184, %v248
    %250 = vdwg.mxu0
    %252 = vset.pattern.permute.xlu0 16
    %253 = vperm.xlu0 %252, %v81
    %v254 = vpop.permute.xlu0 %253
    %257 = vset.pattern.permute.xlu0 16
    %258 = vperm.xlu0 %257, %v82
    %v259 = vpop.permute.xlu0 %258
    %262 = vset.pattern.permute.xlu0 16
    %263 = vperm.xlu0 %262, %v83
    %v264 = vpop.permute.xlu0 %263
    %267 = vset.pattern.permute.xlu0 16
    %268 = vperm.xlu0 %267, %v84
    %v269 = vpop.permute.xlu0 %268
    %v271 = vadd.f32 %v233, %v254
    %v272 = vadd.f32 %v235, %v254
    %v273 = vadd.f32 %v237, %v259
    %v274 = vadd.f32 %v239, %v259
    %v275 = vadd.f32 %v243, %v264
    %v276 = vadd.f32 %v245, %v264
    %v277 = vadd.f32 %v247, %v269
    %v278 = vadd.f32 %v249, %v269
    %v279 = vmax.f32 %v271, 0.0
    %v280 = vmax.f32 %v272, 0.0
    %v281 = vmax.f32 %v273, 0.0
    %v282 = vmax.f32 %v274, 0.0
    %v283 = vmax.f32 %v275, 0.0
    %v284 = vmax.f32 %v276, 0.0
    %v285 = vmax.f32 %v277, 0.0
    %v286 = vmax.f32 %v278, 0.0
    %v287 = vld [vmem:[#allocation8 + $0xe0] sm:$0xff]
    %v288 = vld [vmem:[#allocation8 + $0xe8] sm:$0xff]
    %v289 = vld [vmem:[#allocation8 + $0xf0] sm:$0xff]
    %v290 = vld [vmem:[#allocation8 + $0xf8] sm:$0xff]
    %v291 = vld [vmem:[#allocation8 + $0x100] sm:$0xff]
    %v292 = vld [vmem:[#allocation8 + $0x108] sm:$0xff]
    %v293 = vld [vmem:[#allocation8 + $0x110] sm:$0xff]
    %v294 = vld [vmem:[#allocation8 + $0x118] sm:$0xff]
    %v295 = vld [vmem:[#allocation8 + $0x120] sm:$0x33]
    %v296 = vpack.c.bf16 %v281, %v279
    %v297 = vpack.c.bf16 %v282, %v280
    %v298 = vpack.c.bf16 %v285, %v283
    %v299 = vpack.c.bf16 %v286, %v284
    %v309 = vunpack.c.l.b16 %v287
    %v310 = vunpack.c.h.b16 %v287
    %v311 = vunpack.c.l.b16 %v288
    %v312 = vunpack.c.h.b16 %v288
    %v313 = vunpack.c.l.b16 %v289
    %v314 = vunpack.c.h.b16 %v289
    %v315 = vunpack.c.l.b16 %v290
    %v316 = vunpack.c.h.b16 %v290
    %v317 = vunpack.c.l.b16 %v291
    %v318 = vunpack.c.h.b16 %v291
    %v319 = vunpack.c.l.b16 %v292
    %v320 = vunpack.c.h.b16 %v292
    %v321 = vunpack.c.l.b16 %v293
    %v322 = vunpack.c.h.b16 %v293
    %v323 = vunpack.c.l.b16 %v294
    %v324 = vunpack.c.h.b16 %v294
    %v325 = vunpack.c.l.b16 %v295
    %v326 = vunpack.c.h.b16 %v295
    %v327 = vpack.c.b16 %v311, %v309
    %v328 = vpack.c.b16 %v312, %v310
    %v329 = vpack.c.b16 %v315, %v313
    %v330 = vpack.c.b16 %v316, %v314
    %v331 = vpack.c.b16 %v319, %v317
    %v332 = vpack.c.b16 %v320, %v318
    %v333 = vpack.c.b16 %v323, %v321
    %v334 = vpack.c.b16 %v324, %v322
    %v335 = vpack.c.b16 %v325, %v325
    %v336 = vpack.c.b16 %v326, %v326
    %347 = vmatprep.subr.bf16.mxu0 %v297
    %348 = vmatpush1.bf16.xpose.msra.mxu0 %v296
    %349 = vmatprep.subr.bf16.mxu0 %v299
    %350 = vmatpush1.bf16.xpose.msra.mxu0 %v298
    %351 = vmatprep.subr.bf16.mxu0 0
    %352 = vmatpush1.bf16.xpose.msra.mxu0 0
    %353 = vmatprep.subr.bf16.mxu0 0
    %354 = vmatpush1.bf16.xpose.msra.mxu0 0
    %355 = vmatprep.subr.bf16.mxu0 0
    %356 = vmatpush1.bf16.xpose.msra.mxu0 0
    %357 = vmatprep.subr.bf16.mxu0 0
    %358 = vmatpush1.bf16.xpose.msra.mxu0 0
    %359 = vmatprep.subr.bf16.mxu0 0
    %360 = vmatpush1.bf16.xpose.msra.mxu0 0
    %361 = vmatprep.subr.bf16.mxu0 0
    %362 = vmatpush1.bf16.xpose.msra.mxu0 0
    %363 = vmatprep.subr.bf16.mxu0 0
    %364 = vmatpush1.bf16.xpose.msra.mxu0 0
    %365 = vmatprep.subr.bf16.mxu0 0
    %366 = vmatpush1.bf16.xpose.msra.mxu0 0
    %367 = vmatprep.subr.bf16.mxu0 0
    %368 = vmatpush1.bf16.xpose.msra.mxu0 0
    %369 = vmatprep.subr.bf16.mxu0 0
    %370 = vmatpush1.bf16.xpose.msra.mxu0 0
    %371 = vmatprep.subr.bf16.mxu0 0
    %372 = vmatpush1.bf16.xpose.msra.mxu0 0
    %373 = vmatprep.subr.bf16.mxu0 0
    %374 = vmatpush1.bf16.xpose.msra.mxu0 0
    %375 = vmatprep.subr.bf16.mxu0 0
    %376 = vmatpush1.bf16.xpose.msra.mxu0 0
    %377 = vmatprep.subr.bf16.mxu0 0
    %378 = vmatpush1.bf16.xpose.msra.mxu0 0
    %379 = vmatprep.mubr.bf16.mxu0 %v328
    %380 = vmatmul.mubr.bf16.gmra.mrb[0].mxu0 %v327
    %v381 = vpop.f32.mrb[0].mxu0
    %v382 = vadd.f32 0.0, %v381
    %v383 = vpop.f32.mrb[0].mxu0
    %v384 = vpop.f32.mrb[0].mxu0
    %v385 = vadd.f32 0.0, %v384
    %v386 = vpop.f32.mrb[0].mxu0
    %387 = vmatprep.mubr.bf16.mxu0 %v330
    %388 = vmatmul.mubr.bf16.gmra.mrb[0].mxu0 %v329
    %v389 = vpop.f32.mrb[0].mxu0
    %v390 = vadd.f32 0.0, %v389
    %v391 = vpop.f32.mrb[0].mxu0
    %v392 = vpop.f32.mrb[0].mxu0
    %v393 = vadd.f32 0.0, %v392
    %v394 = vpop.f32.mrb[0].mxu0
    %395 = vmatprep.mubr.bf16.mxu0 %v332
    %396 = vmatmul.mubr.bf16.gmra.mrb[0].mxu0 %v331
    %v397 = vpop.f32.mrb[0].mxu0
    %v398 = vadd.f32 0.0, %v397
    %v399 = vpop.f32.mrb[0].mxu0
    %v400 = vpop.f32.mrb[0].mxu0
    %v401 = vadd.f32 0.0, %v400
    %v402 = vpop.f32.mrb[0].mxu0
    %403 = vmatprep.mubr.bf16.mxu0 %v334
    %404 = vmatmul.mubr.bf16.gmra.mrb[0].mxu0 %v333
    %v405 = vpop.f32.mrb[0].mxu0
    %v406 = vadd.f32 0.0, %v405
    %v407 = vpop.f32.mrb[0].mxu0
    %v408 = vpop.f32.mrb[0].mxu0
    %v409 = vadd.f32 0.0, %v408
    %v410 = vpop.f32.mrb[0].mxu0
    %411 = vmatprep.mubr.bf16.mxu0 %v336
    %412 = vmatmul.mubr.bf16.gmra.mrb[0].mxu0 %v335
    %v413 = vpop.f32.mrb[0].mxu0
    %v414 = vadd.f32 0.0, %v413
    %v415 = vpop.f32.mrb[0].mxu0
    %v416 = vpop.f32.mrb[0].mxu0
    %v417 = vpop.f32.mrb[0].mxu0
    %418 = vdwg.mxu0
    %vm419 = vcmask 261120
    %420 = vst.msk [vmem:[#allocation3] sm:$0xff] %vm419, %v382
    %421 = vst.msk [vmem:[#allocation3 + $0x8] sm:$0xff] %vm419, %v385
    %422 = vst.msk [vmem:[#allocation3 + $0x10] sm:$0xff] %vm419, %v390
    %423 = vst.msk [vmem:[#allocation3 + $0x18] sm:$0xff] %vm419, %v393
    %424 = vst.msk [vmem:[#allocation3 + $0x20] sm:$0xff] %vm419, %v398
    %425 = vst.msk [vmem:[#allocation3 + $0x28] sm:$0xff] %vm419, %v401
    %426 = vst.msk [vmem:[#allocation3 + $0x30] sm:$0xff] %vm419, %v406
    %427 = vst.msk [vmem:[#allocation3 + $0x38] sm:$0xff] %vm419, %v409
    %vm428 = vcmask 256000
    %429 = vst.msk [vmem:[#allocation3 + $0x40] sm:$0x7] %vm428, %v414
    %v430 = vld [vmem:[#allocation3] sm:$0xff]
    %v431 = vld [vmem:[#allocation3 + $0x8] sm:$0xff]
    %v432 = vld [vmem:[#allocation3 + $0x10] sm:$0xff]
    %v433 = vld [vmem:[#allocation3 + $0x18] sm:$0xff]
    %v434 = vld [vmem:[#allocation3 + $0x20] sm:$0xff]
    %v435 = vld [vmem:[#allocation3 + $0x28] sm:$0xff]
    %v436 = vld [vmem:[#allocation3 + $0x30] sm:$0xff]
    %v437 = vld [vmem:[#allocation3 + $0x38] sm:$0xff]
    %v438 = vld [vmem:[#allocation3 + $0x40] sm:$0x3]
    %v439 = vld [vmem:[#allocation3 + $0x1] sm:$0xff]
    %v440 = vld [vmem:[#allocation3 + $0x9] sm:$0xff]
    %v441 = vld [vmem:[#allocation3 + $0x11] sm:$0xff]
    %v442 = vld [vmem:[#allocation3 + $0x19] sm:$0xff]
    %v443 = vld [vmem:[#allocation3 + $0x21] sm:$0xff]
    %v444 = vld [vmem:[#allocation3 + $0x29] sm:$0xff]
    %v445 = vld [vmem:[#allocation3 + $0x31] sm:$0xff]
    %v446 = vld [vmem:[#allocation3 + $0x39] sm:$0xff]
    %v447 = vld [vmem:[#allocation3 + $0x41] sm:$0x3]
    %457 = vrot.lane.b32.xlu0 %v439, 32
    %v458 = vpop.permute.xlu0 %457
    %459 = vrot.lane.b32.xlu0 %v440, 32
    %v460 = vpop.permute.xlu0 %459
    %461 = vrot.lane.b32.xlu0 %v441, 32
    %v462 = vpop.permute.xlu0 %461
    %463 = vrot.lane.b32.xlu0 %v442, 32
    %v464 = vpop.permute.xlu0 %463
    %465 = vrot.lane.b32.xlu0 %v443, 32
    %v466 = vpop.permute.xlu0 %465
    %467 = vrot.lane.b32.xlu0 %v444, 32
    %v468 = vpop.permute.xlu0 %467
    %469 = vrot.lane.b32.xlu0 %v445, 32
    %v470 = vpop.permute.xlu0 %469
    %471 = vrot.lane.b32.xlu0 %v446, 32
    %v472 = vpop.permute.xlu0 %471
    %473 = vrot.lane.b32.xlu0 %v447, 32
    %v474 = vpop.permute.xlu0 %473
    %v484 = vsel %vm419, %v430, %v458
    %v485 = vsel %vm419, %v431, %v460
    %v486 = vsel %vm419, %v432, %v462
    %v487 = vsel %vm419, %v433, %v464
    %v488 = vsel %vm419, %v434, %v466
    %v489 = vsel %vm419, %v435, %v468
    %v490 = vsel %vm419, %v436, %v470
    %v491 = vsel %vm419, %v437, %v472
    %v492 = vsel %vm419, %v438, %v474
    %v493 = vld [vmem:[#allocation8 + $0x20] sm:$0xf]
    %v494 = vld [vmem:[#allocation8 + $0x28] sm:$0xf]
    %v495 = vld [vmem:[#allocation8 + $0x30] sm:$0xf]
    %v496 = vld [vmem:[#allocation8 + $0x38] sm:$0xf]
    %v497 = vld [vmem:[#allocation8 + $0x40] sm:$0xf]
    %v498 = vld [vmem:[#allocation8 + $0x48] sm:$0xf]
    %v499 = vld [vmem:[#allocation8 + $0x50] sm:$0xf]
    %v500 = vld [vmem:[#allocation8 + $0x58] sm:$0xf]
    %v501 = vpack.c.bf16 %v485, %v484
    %v502 = vpack.c.bf16 %v487, %v486
    %v503 = vpack.c.bf16 %v489, %v488
    %v504 = vpack.c.bf16 %v491, %v490
    %v505 = vpack.c.bf16 %v492, %v492
    %v506 = vld [vmem:[%s3] sm:$0x1]
    %v508 = vlaneseq
    %v509 = vshrl.u32 %v508, 7
    %v510 = vsub.s32 0, %v509
    %v511 = vrot.slane %v506, %v510
    %v521 = vunpack.c.l.b16 %v493
    %v522 = vunpack.c.l.b16 %v494
    %v523 = vunpack.c.l.b16 %v495
    %v524 = vunpack.c.l.b16 %v496
    %v525 = vunpack.c.l.b16 %v497
    %v526 = vunpack.c.l.b16 %v498
    %v527 = vunpack.c.l.b16 %v499
    %v528 = vunpack.c.l.b16 %v500
    %v529 = vpack.c.b16 %v522, %v521
    %v530 = vpack.c.b16 %v524, %v523
    %v531 = vpack.c.b16 %v526, %v525
    %v532 = vpack.c.b16 %v528, %v527
    %vm537 = vcmask 523264
    %v539 = vsel %vm537, %v501, 0
    %v542 = vsel %vm537, %v502, 0
    %v545 = vsel %vm537, %v503, 0
    %v548 = vsel %vm537, %v504, 0
    %v551 = vsel %vm537, %v505, 0
    %553 = vmatprep.subr.bf16.mxu0 0
    %554 = vmatpush1.bf16.msra.mxu0 %v529
    %555 = vmatprep.subr.bf16.mxu0 0
    %556 = vmatpush1.bf16.msra.mxu0 %v530
    %557 = vmatprep.subr.bf16.mxu0 0
    %558 = vmatpush1.bf16.msra.mxu0 %v531
    %559 = vmatprep.subr.bf16.mxu0 0
    %560 = vmatpush1.bf16.msra.mxu0 %v532
    %561 = vmatprep.subr.bf16.mxu0 0
    %562 = vmatpush1.bf16.msra.mxu0 0
    %563 = vmatprep.subr.bf16.mxu0 0
    %564 = vmatpush1.bf16.msra.mxu0 0
    %565 = vmatprep.subr.bf16.mxu0 0
    %566 = vmatpush1.bf16.msra.mxu0 0
    %567 = vmatprep.subr.bf16.mxu0 0
    %568 = vmatpush1.bf16.msra.mxu0 0
    %569 = vmatprep.subr.bf16.mxu0 0
    %570 = vmatpush1.bf16.msra.mxu0 0
    %571 = vmatprep.subr.bf16.mxu0 0
    %572 = vmatpush1.bf16.msra.mxu0 0
    %573 = vmatprep.subr.bf16.mxu0 0
    %574 = vmatpush1.bf16.msra.mxu0 0
    %575 = vmatprep.subr.bf16.mxu0 0
    %576 = vmatpush1.bf16.msra.mxu0 0
    %577 = vmatprep.subr.bf16.mxu0 0
    %578 = vmatpush1.bf16.msra.mxu0 0
    %579 = vmatprep.subr.bf16.mxu0 0
    %580 = vmatpush1.bf16.msra.mxu0 0
    %581 = vmatprep.subr.bf16.mxu0 0
    %582 = vmatpush1.bf16.msra.mxu0 0
    %583 = vmatprep.subr.bf16.mxu0 0
    %584 = vmatpush1.bf16.msra.mxu0 0
    %585 = vmatprep.mubr.bf16.mxu0 0
    %586 = vmatmul.mubr.bf16.gmra.mrb[0].mxu0 %v539
    %v587 = vpop.f32.mrb[0].mxu0
    %v588 = vadd.f32 %v511, %v587
    %v589 = vpop.f32.mrb[0].mxu0
    %v590 = vpop.f32.mrb[0].mxu0
    %v591 = vadd.f32 %v511, %v590
    %v592 = vpop.f32.mrb[0].mxu0
    %593 = vmatprep.mubr.bf16.mxu0 0
    %594 = vmatmul.mubr.bf16.gmra.mrb[0].mxu0 %v542
    %v595 = vpop.f32.mrb[0].mxu0
    %v596 = vadd.f32 %v511, %v595
    %v597 = vpop.f32.mrb[0].mxu0
    %v598 = vpop.f32.mrb[0].mxu0
    %v599 = vadd.f32 %v511, %v598
    %v600 = vpop.f32.mrb[0].mxu0
    %601 = vmatprep.mubr.bf16.mxu0 0
    %602 = vmatmul.mubr.bf16.gmra.mrb[0].mxu0 %v545
    %v603 = vpop.f32.mrb[0].mxu0
    %v604 = vadd.f32 %v511, %v603
    %v605 = vpop.f32.mrb[0].mxu0
    %v606 = vpop.f32.mrb[0].mxu0
    %v607 = vadd.f32 %v511, %v606
    %v608 = vpop.f32.mrb[0].mxu0
    %609 = vmatprep.mubr.bf16.mxu0 0
    %610 = vmatmul.mubr.bf16.gmra.mrb[0].mxu0 %v548
    %v611 = vpop.f32.mrb[0].mxu0
    %v612 = vadd.f32 %v511, %v611
    %v613 = vpop.f32.mrb[0].mxu0
    %v614 = vpop.f32.mrb[0].mxu0
    %v615 = vadd.f32 %v511, %v614
    %v616 = vpop.f32.mrb[0].mxu0
    %617 = vmatprep.mubr.bf16.mxu0 0
    %618 = vmatmul.mubr.bf16.gmra.mrb[0].mxu0 %v551
    %v619 = vpop.f32.mrb[0].mxu0
    %v620 = vadd.f32 %v511, %v619
    %v621 = vpop.f32.mrb[0].mxu0
    %v622 = vpop.f32.mrb[0].mxu0
    %v623 = vpop.f32.mrb[0].mxu0
    %624 = vdwg.mxu0
    %v625 = vmax.f32 %v588, 0.0
    %v626 = vmax.f32 %v591, 0.0
    %v627 = vmax.f32 %v596, 0.0
    %v628 = vmax.f32 %v599, 0.0
    %v629 = vmax.f32 %v604, 0.0
    %v630 = vmax.f32 %v607, 0.0
    %v631 = vmax.f32 %v612, 0.0
    %v632 = vmax.f32 %v615, 0.0
    %v633 = vmax.f32 %v620, 0.0
    %v634 = vld [vmem:[#allocation8 + $0x130] sm:$0xf]
    %v635 = vld [vmem:[#allocation8 + $0x138] sm:$0xf]
    %v636 = vld [vmem:[#allocation8 + $0x140] sm:$0x3]
    %v637 = vpack.c.bf16 %v626, %v625
    %v638 = vpack.c.bf16 %v628, %v627
    %v639 = vpack.c.bf16 %v630, %v629
    %v640 = vpack.c.bf16 %v632, %v631
    %v641 = vpack.c.bf16 %v633, %v633
    %v645 = vunpack.c.l.b16 %v634
    %v646 = vunpack.c.l.b16 %v635
    %v647 = vunpack.c.l.b16 %v636
    %v648 = vpack.c.b16 %v646, %v645
    %v649 = vpack.c.b16 %v647, %v647
    %vm650 = vcmask 539648
    %v652 = vsel %vm650, %v648, 0
    %v655 = vsel %vm650, %v649, 0
    %vm657 = vcmask 1040384
    %v659 = vsel %vm657, %v641, 0
    %661 = vmatprep.subr.bf16.mxu0 0
    %662 = vmatpush1.bf16.msra.mxu0 %v637
    %663 = vmatprep.subr.bf16.mxu0 0
    %664 = vmatpush1.bf16.msra.mxu0 %v638
    %665 = vmatprep.subr.bf16.mxu0 0
    %666 = vmatpush1.bf16.msra.mxu0 %v639
    %667 = vmatprep.subr.bf16.mxu0 0
    %668 = vmatpush1.bf16.msra.mxu0 %v640
    %669 = vmatprep.subr.bf16.mxu0 0
    %670 = vmatpush1.bf16.msra.mxu0 %v659
    %671 = vmatprep.subr.bf16.mxu0 0
    %672 = vmatpush1.bf16.msra.mxu0 0
    %673 = vmatprep.subr.bf16.mxu0 0
    %674 = vmatpush1.bf16.msra.mxu0 0
    %675 = vmatprep.subr.bf16.mxu0 0
    %676 = vmatpush1.bf16.msra.mxu0 0
    %677 = vmatprep.subr.bf16.mxu0 0
    %678 = vmatpush1.bf16.msra.mxu0 0
    %679 = vmatprep.subr.bf16.mxu0 0
    %680 = vmatpush1.bf16.msra.mxu0 0
    %681 = vmatprep.subr.bf16.mxu0 0
    %682 = vmatpush1.bf16.msra.mxu0 0
    %683 = vmatprep.subr.bf16.mxu0 0
    %684 = vmatpush1.bf16.msra.mxu0 0
    %685 = vmatprep.subr.bf16.mxu0 0
    %686 = vmatpush1.bf16.msra.mxu0 0
    %687 = vmatprep.subr.bf16.mxu0 0
    %688 = vmatpush1.bf16.msra.mxu0 0
    %689 = vmatprep.subr.bf16.mxu0 0
    %690 = vmatpush1.bf16.msra.mxu0 0
    %691 = vmatprep.subr.bf16.mxu0 0
    %692 = vmatpush1.bf16.msra.mxu0 0
    %693 = vmatprep.mubr.bf16.mxu0 0
    %694 = vmatmul.mubr.bf16.gmra.mrb[0].mxu0 %v652
    %v695 = vpop.f32.mrb[0].mxu0
    %v696 = vadd.f32 0.0, %v695
    %v697 = vpop.f32.mrb[0].mxu0
    %v698 = vpop.f32.mrb[0].mxu0
    %v699 = vadd.f32 0.0, %v698
    %v700 = vpop.f32.mrb[0].mxu0
    %701 = vmatprep.mubr.bf16.mxu0 0
    %702 = vmatmul.mubr.bf16.gmra.mrb[0].mxu0 %v655
    %v703 = vpop.f32.mrb[0].mxu0
    %v704 = vadd.f32 0.0, %v703
    %v705 = vpop.f32.mrb[0].mxu0
    %v706 = vpop.f32.mrb[0].mxu0
    %v707 = vpop.f32.mrb[0].mxu0
    %708 = vdwg.mxu0
    %709 = vst.msk [vmem:[#allocation4] sm:$0xff] %vm537, %v696
    %710 = vst.msk [vmem:[#allocation4 + $0x8] sm:$0xff] %vm537, %v699
    %vm711 = vcmask 518144
    %712 = vst.msk [vmem:[#allocation4 + $0x10] sm:$0x7] %vm711, %v704
    %v713 = vld [vmem:[#allocation4] sm:$0xff]
    %v714 = vld [vmem:[#allocation4 + $0x8] sm:$0xff]
    %v715 = vld [vmem:[#allocation4 + $0x10] sm:$0x3]
    %v716 = vld [vmem:[#allocation4 + $0x1] sm:$0xff]
    %v717 = vld [vmem:[#allocation4 + $0x9] sm:$0xff]
    %v718 = vld [vmem:[#allocation4 + $0x11] sm:$0x3]
    %722 = vrot.lane.b32.xlu0 %v716, 64
    %v723 = vpop.permute.xlu0 %722
    %724 = vrot.lane.b32.xlu0 %v717, 64
    %v725 = vpop.permute.xlu0 %724
    %726 = vrot.lane.b32.xlu0 %v718, 64
    %v727 = vpop.permute.xlu0 %726
    %v731 = vsel %vm537, %v713, %v723
    %v732 = vsel %vm537, %v714, %v725
    %v733 = vsel %vm537, %v715, %v727
    %v734 = vld [vmem:[#allocation8 + $0x60] sm:$0xf]
    %v735 = vld [vmem:[#allocation8 + $0x68] sm:$0xf]
    %v736 = vld [vmem:[#allocation8 + $0x70] sm:$0xf]
    %v737 = vld [vmem:[#allocation8 + $0x78] sm:$0xf]
    %v738 = vld [vmem:[#allocation8 + $0x80] sm:$0xf]
    %v739 = vld [vmem:[#allocation8 + $0x88] sm:$0xf]
    %v740 = vld [vmem:[#allocation8 + $0x90] sm:$0xf]
    %v741 = vld [vmem:[#allocation8 + $0x98] sm:$0xf]
    %v742 = vld [vmem:[#allocation8 + $0xa0] sm:$0xf]
    %v743 = vld [vmem:[#allocation8 + $0xa8] sm:$0xf]
    %v744 = vld [vmem:[#allocation8 + $0xb0] sm:$0xf]
    %v745 = vld [vmem:[#allocation8 + $0xb8] sm:$0xf]
    %v746 = vld [vmem:[#allocation8 + $0xc0] sm:$0xf]
    %v747 = vld [vmem:[#allocation8 + $0xc8] sm:$0xf]
    %v748 = vld [vmem:[#allocation8 + $0xd0] sm:$0xf]
    %v749 = vld [vmem:[#allocation8 + $0xd8] sm:$0xf]
    %v750 = vpack.c.bf16 %v732, %v731
    %v751 = vpack.c.bf16 %v733, %v733
    %v752 = vld [vmem:[%s3 + $0x1] sm:$0x1]
    %v754 = vlaneseq
    %v755 = vshrl.u32 %v754, 7
    %v756 = vsub.s32 0, %v755
    %v757 = vrot.slane %v752, %v756
    %v775 = vunpack.c.l.b16 %v734
    %v776 = vunpack.c.l.b16 %v735
    %v777 = vunpack.c.l.b16 %v736
    %v778 = vunpack.c.l.b16 %v737
    %v779 = vunpack.c.l.b16 %v738
    %v780 = vunpack.c.l.b16 %v739
    %v781 = vunpack.c.l.b16 %v740
    %v782 = vunpack.c.l.b16 %v741
    %v783 = vunpack.c.l.b16 %v742
    %v784 = vunpack.c.l.b16 %v743
    %v785 = vunpack.c.l.b16 %v744
    %v786 = vunpack.c.l.b16 %v745
    %v787 = vunpack.c.l.b16 %v746
    %v788 = vunpack.c.l.b16 %v747
    %v789 = vunpack.c.l.b16 %v748
    %v790 = vunpack.c.l.b16 %v749
    %v791 = vpack.c.b16 %v776, %v775
    %v792 = vpack.c.b16 %v778, %v777
    %v793 = vpack.c.b16 %v780, %v779
    %v794 = vpack.c.b16 %v782, %v781
    %v795 = vpack.c.b16 %v784, %v783
    %v796 = vpack.c.b16 %v786, %v785
    %v797 = vpack.c.b16 %v788, %v787
    %v798 = vpack.c.b16 %v790, %v789
    %807 = vmatprep.subr.bf16.mxu0 0
    %808 = vmatpush1.bf16.msra.mxu0 %v791
    %809 = vmatprep.subr.bf16.mxu0 0
    %810 = vmatpush1.bf16.msra.mxu0 %v792
    %811 = vmatprep.subr.bf16.mxu0 0
    %812 = vmatpush1.bf16.msra.mxu0 %v793
    %813 = vmatprep.subr.bf16.mxu0 0
    %814 = vmatpush1.bf16.msra.mxu0 %v794
    %815 = vmatprep.subr.bf16.mxu0 0
    %816 = vmatpush1.bf16.msra.mxu0 %v795
    %817 = vmatprep.subr.bf16.mxu0 0
    %818 = vmatpush1.bf16.msra.mxu0 %v796
    %819 = vmatprep.subr.bf16.mxu0 0
    %820 = vmatpush1.bf16.msra.mxu0 %v797
    %821 = vmatprep.subr.bf16.mxu0 0
    %822 = vmatpush1.bf16.msra.mxu0 %v798
    %823 = vmatprep.subr.bf16.mxu0 0
    %824 = vmatpush1.bf16.msra.mxu0 0
    %825 = vmatprep.subr.bf16.mxu0 0
    %826 = vmatpush1.bf16.msra.mxu0 0
    %827 = vmatprep.subr.bf16.mxu0 0
    %828 = vmatpush1.bf16.msra.mxu0 0
    %829 = vmatprep.subr.bf16.mxu0 0
    %830 = vmatpush1.bf16.msra.mxu0 0
    %831 = vmatprep.subr.bf16.mxu0 0
    %832 = vmatpush1.bf16.msra.mxu0 0
    %833 = vmatprep.subr.bf16.mxu0 0
    %834 = vmatpush1.bf16.msra.mxu0 0
    %835 = vmatprep.subr.bf16.mxu0 0
    %836 = vmatpush1.bf16.msra.mxu0 0
    %837 = vmatprep.subr.bf16.mxu0 0
    %838 = vmatpush1.bf16.msra.mxu0 0
    %839 = vmatprep.mubr.bf16.mxu0 0
    %840 = vmatmul.mubr.bf16.gmra.mrb[0].mxu0 %v750
    %v841 = vpop.f32.mrb[0].mxu0
    %v842 = vadd.f32 %v757, %v841
    %v843 = vpop.f32.mrb[0].mxu0
    %v844 = vpop.f32.mrb[0].mxu0
    %v845 = vadd.f32 %v757, %v844
    %v846 = vpop.f32.mrb[0].mxu0
    %847 = vmatprep.mubr.bf16.mxu0 0
    %848 = vmatmul.mubr.bf16.gmra.mrb[0].mxu0 %v751
    %v849 = vpop.f32.mrb[0].mxu0
    %v850 = vadd.f32 %v757, %v849
    %v851 = vpop.f32.mrb[0].mxu0
    %v852 = vpop.f32.mrb[0].mxu0
    %v853 = vpop.f32.mrb[0].mxu0
    %854 = vdwg.mxu0
    %v855 = vmax.f32 %v842, 0.0
    %v856 = vmax.f32 %v845, 0.0
    %v857 = vmax.f32 %v850, 0.0
    %v858 = vld [vmem:[#allocation8 + $0x150] sm:$0x3]
    %v859 = vpack.c.bf16 %v856, %v855
    %v860 = vpack.c.bf16 %v857, %v857
    %vm861 = vcmask 146432
    %v863 = vsel %vm861, %v858, 0
    %v866 = vsel %vm657, %v860, 0
    %868 = vmatprep.subr.bf16.mxu0 0
    %869 = vmatpush1.bf16.msra.mxu0 %v859
    %870 = vmatprep.subr.bf16.mxu0 0
    %871 = vmatpush1.bf16.msra.mxu0 %v866
    %872 = vmatprep.subr.bf16.mxu0 0
    %873 = vmatpush1.bf16.msra.mxu0 0
    %874 = vmatprep.subr.bf16.mxu0 0
    %875 = vmatpush1.bf16.msra.mxu0 0
    %876 = vmatprep.subr.bf16.mxu0 0
    %877 = vmatpush1.bf16.msra.mxu0 0
    %878 = vmatprep.subr.bf16.mxu0 0
    %879 = vmatpush1.bf16.msra.mxu0 0
    %880 = vmatprep.subr.bf16.mxu0 0
    %881 = vmatpush1.bf16.msra.mxu0 0
    %882 = vmatprep.subr.bf16.mxu0 0
    %883 = vmatpush1.bf16.msra.mxu0 0
    %884 = vmatprep.subr.bf16.mxu0 0
    %885 = vmatpush1.bf16.msra.mxu0 0
    %886 = vmatprep.subr.bf16.mxu0 0
    %887 = vmatpush1.bf16.msra.mxu0 0
    %888 = vmatprep.subr.bf16.mxu0 0
    %889 = vmatpush1.bf16.msra.mxu0 0
    %890 = vmatprep.subr.bf16.mxu0 0
    %891 = vmatpush1.bf16.msra.mxu0 0
    %892 = vmatprep.subr.bf16.mxu0 0
    %893 = vmatpush1.bf16.msra.mxu0 0
    %894 = vmatprep.subr.bf16.mxu0 0
    %895 = vmatpush1.bf16.msra.mxu0 0
    %896 = vmatprep.subr.bf16.mxu0 0
    %897 = vmatpush1.bf16.msra.mxu0 0
    %898 = vmatprep.subr.bf16.mxu0 0
    %899 = vmatpush1.bf16.msra.mxu0 0
    %900 = vmatprep.mubr.bf16.mxu0 0
    %901 = vmatmul.mubr.bf16.gmra.mrb[0].mxu0 %v863
    %v902 = vpop.f32.mrb[0].mxu0
    %v903 = vadd.f32 0.0, %v902
    %v904 = vpop.f32.mrb[0].mxu0
    %v905 = vpop.f32.mrb[0].mxu0
    %v906 = vpop.f32.mrb[0].mxu0
    %907 = vdwg.mxu0
    %v909 = vrot.slane %v903, 2
    %v911 = vld [vmem:[#allocation10] sm:$0xff]
    %v912 = vld [vmem:[#allocation10 + $0x8] sm:$0xff]
    %v913 = vld [vmem:[#allocation10 + $0x10] sm:$0xff]
    %v914 = vld [vmem:[#allocation10 + $0x18] sm:$0xff]
    %v915 = vld [vmem:[#allocation10 + $0x20] sm:$0xff]
    %v916 = vld [vmem:[#allocation10 + $0x28] sm:$0xff]
    %v917 = vld [vmem:[#allocation10 + $0x30] sm:$0xff]
    %v918 = vld [vmem:[#allocation10 + $0x38] sm:$0xff]
    %v919 = vld [vmem:[#allocation10 + $0x40] sm:$0xff]
    %v920 = vld [vmem:[#allocation10 + $0x48] sm:$0xff]
    %v921 = vld [vmem:[#allocation10 + $0x50] sm:$0xff]
    %v922 = vld [vmem:[#allocation10 + $0x58] sm:$0xff]
    %v923 = vld [vmem:[#allocation10 + $0x60] sm:$0xff]
    %v924 = vld [vmem:[#allocation10 + $0x68] sm:$0xff]
    %v925 = vld [vmem:[#allocation10 + $0x70] sm:$0xff]
    %v926 = vld [vmem:[#allocation10 + $0x78] sm:$0xff]
    %v927 = vld [vmem:[#allocation10 + $0x80] sm:$0xff]
    %v928 = vld [vmem:[#allocation10 + $0x88] sm:$0xff]
    %v929 = vld [vmem:[#allocation10 + $0x90] sm:$0xff]
    %v930 = vld [vmem:[#allocation10 + $0x98] sm:$0xff]
    %v931 = vld [vmem:[#allocation10 + $0xa0] sm:$0xff]
    %v932 = vld [vmem:[#allocation10 + $0xa8] sm:$0xff]
    %v933 = vld [vmem:[#allocation10 + $0xb0] sm:$0xff]
    %v934 = vld [vmem:[#allocation10 + $0xb8] sm:$0xff]
    %v935 = vld [vmem:[#allocation10 + $0xc0] sm:$0xff]
    %v936 = vld [vmem:[#allocation10 + $0xc8] sm:$0xff]
    %v937 = vld [vmem:[#allocation10 + $0xd0] sm:$0xff]
    %v938 = vld [vmem:[#allocation10 + $0xd8] sm:$0xff]
    %v939 = vld [vmem:[#allocation10 + $0xe0] sm:$0xff]
    %v940 = vld [vmem:[#allocation10 + $0xe8] sm:$0xff]
    %v941 = vld [vmem:[#allocation10 + $0xf0] sm:$0xff]
    %v942 = vld [vmem:[#allocation10 + $0xf8] sm:$0xff]
    %v943 = vld [vmem:[#allocation10 + $0x100] sm:$0xff]
    %v944 = vld [vmem:[#allocation10 + $0x108] sm:$0xff]
    %v945 = vld [vmem:[#allocation10 + $0x110] sm:$0xff]
    %v946 = vld [vmem:[#allocation10 + $0x118] sm:$0xff]
    %v947 = vld [vmem:[#allocation10 + $0x120] sm:$0xff]
    %v948 = vld [vmem:[#allocation10 + $0x128] sm:$0xff]
    %v949 = vld [vmem:[#allocation10 + $0x130] sm:$0xff]
    %v950 = vld [vmem:[#allocation10 + $0x138] sm:$0xff]
    %v951 = vld [vmem:[#allocation10 + $0x140] sm:$0xff]
    %v952 = vld [vmem:[#allocation10 + $0x148] sm:$0xff]
    %v953 = vld [vmem:[#allocation10 + $0x150] sm:$0xff]
    %v954 = vld [vmem:[#allocation10 + $0x158] sm:$0xff]
    %v955 = vld [vmem:[#allocation10 + $0x160] sm:$0xff]
    %v956 = vld [vmem:[#allocation10 + $0x168] sm:$0xff]
    %v957 = vld [vmem:[#allocation10 + $0x170] sm:$0xff]
    %v958 = vld [vmem:[#allocation10 + $0x178] sm:$0xff]
    %v959 = vld [vmem:[#allocation10 + $0x180] sm:$0xff]
    %v960 = vld [vmem:[#allocation10 + $0x188] sm:$0xff]
    %v961 = vld [vmem:[#allocation10 + $0x190] sm:$0xff]
    %v962 = vld [vmem:[#allocation10 + $0x198] sm:$0xff]
    %v963 = vld [vmem:[#allocation10 + $0x1a0] sm:$0xff]
    %v964 = vld [vmem:[#allocation10 + $0x1a8] sm:$0xff]
    %v965 = vld [vmem:[#allocation10 + $0x1b0] sm:$0xff]
    %v966 = vld [vmem:[#allocation10 + $0x1b8] sm:$0xff]
    %v967 = vld [vmem:[#allocation10 + $0x1c0] sm:$0xff]
    %v968 = vld [vmem:[#allocation10 + $0x1c8] sm:$0xff]
    %v969 = vld [vmem:[#allocation10 + $0x1d0] sm:$0xff]
    %v970 = vld [vmem:[#allocation10 + $0x1d8] sm:$0xff]
    %v971 = vld [vmem:[#allocation10 + $0x1e0] sm:$0xff]
    %v972 = vld [vmem:[#allocation10 + $0x1e8] sm:$0xff]
    %v973 = vld [vmem:[#allocation10 + $0x1f0] sm:$0xff]
    %v974 = vld [vmem:[#allocation10 + $0x1f8] sm:$0xff]
    %v975 = vpack.c.bf16 %v903, %v903
    %v976 = vpack.c.bf16 %v909, %v909
    %v977 = vld [vmem:[%s3 + $0x2] sm:$0xf]
    %v979 = vlaneseq
    %v980 = vshrl.u32 %v979, 7
    %v981 = vsub.s32 0, %v980
    %v982 = vrot.slane %v977, %v981
    %v983 = vlaneseq
    %v984 = vshrl.u32 %v983, 7
    %v985 = vsub.s32 1, %v984
    %v986 = vrot.slane %v977, %v985
    %v987 = vlaneseq
    %v988 = vshrl.u32 %v987, 7
    %v989 = vsub.s32 2, %v988
    %v990 = vrot.slane %v977, %v989
    %v991 = vlaneseq
    %v992 = vshrl.u32 %v991, 7
    %v993 = vsub.s32 3, %v992
    %v994 = vrot.slane %v977, %v993
    %v1063 = vunpack.c.l.b16 %v911
    %v1064 = vunpack.c.h.b16 %v911
    %v1065 = vunpack.c.l.b16 %v912
    %v1066 = vunpack.c.h.b16 %v912
    %v1067 = vunpack.c.l.b16 %v913
    %v1068 = vunpack.c.h.b16 %v913
    %v1069 = vunpack.c.l.b16 %v914
    %v1070 = vunpack.c.h.b16 %v914
    %v1071 = vunpack.c.l.b16 %v915
    %v1072 = vunpack.c.h.b16 %v915
    %v1073 = vunpack.c.l.b16 %v916
    %v1074 = vunpack.c.h.b16 %v916
    %v1075 = vunpack.c.l.b16 %v917
    %v1076 = vunpack.c.h.b16 %v917
    %v1077 = vunpack.c.l.b16 %v918
    %v1078 = vunpack.c.h.b16 %v918
    %v1079 = vunpack.c.l.b16 %v919
    %v1080 = vunpack.c.h.b16 %v919
    %v1081 = vunpack.c.l.b16 %v920
    %v1082 = vunpack.c.h.b16 %v920
    %v1083 = vunpack.c.l.b16 %v921
    %v1084 = vunpack.c.h.b16 %v921
    %v1085 = vunpack.c.l.b16 %v922
    %v1086 = vunpack.c.h.b16 %v922
    %v1087 = vunpack.c.l.b16 %v923
    %v1088 = vunpack.c.h.b16 %v923
    %v1089 = vunpack.c.l.b16 %v924
    %v1090 = vunpack.c.h.b16 %v924
    %v1091 = vunpack.c.l.b16 %v925
    %v1092 = vunpack.c.h.b16 %v925
    %v1093 = vunpack.c.l.b16 %v926
    %v1094 = vunpack.c.h.b16 %v926
    %v1095 = vunpack.c.l.b16 %v927
    %v1096 = vunpack.c.h.b16 %v927
    %v1097 = vunpack.c.l.b16 %v928
    %v1098 = vunpack.c.h.b16 %v928
    %v1099 = vunpack.c.l.b16 %v929
    %v1100 = vunpack.c.h.b16 %v929
    %v1101 = vunpack.c.l.b16 %v930
    %v1102 = vunpack.c.h.b16 %v930
    %v1103 = vunpack.c.l.b16 %v931
    %v1104 = vunpack.c.h.b16 %v931
    %v1105 = vunpack.c.l.b16 %v932
    %v1106 = vunpack.c.h.b16 %v932
    %v1107 = vunpack.c.l.b16 %v933
    %v1108 = vunpack.c.h.b16 %v933
    %v1109 = vunpack.c.l.b16 %v934
    %v1110 = vunpack.c.h.b16 %v934
    %v1111 = vunpack.c.l.b16 %v935
    %v1112 = vunpack.c.h.b16 %v935
    %v1113 = vunpack.c.l.b16 %v936
    %v1114 = vunpack.c.h.b16 %v936
    %v1115 = vunpack.c.l.b16 %v937
    %v1116 = vunpack.c.h.b16 %v937
    %v1117 = vunpack.c.l.b16 %v938
    %v1118 = vunpack.c.h.b16 %v938
    %v1119 = vunpack.c.l.b16 %v939
    %v1120 = vunpack.c.h.b16 %v939
    %v1121 = vunpack.c.l.b16 %v940
    %v1122 = vunpack.c.h.b16 %v940
    %v1123 = vunpack.c.l.b16 %v941
    %v1124 = vunpack.c.h.b16 %v941
    %v1125 = vunpack.c.l.b16 %v942
    %v1126 = vunpack.c.h.b16 %v942
    %v1127 = vunpack.c.l.b16 %v943
    %v1128 = vunpack.c.h.b16 %v943
    %v1129 = vunpack.c.l.b16 %v944
    %v1130 = vunpack.c.h.b16 %v944
    %v1131 = vunpack.c.l.b16 %v945
    %v1132 = vunpack.c.h.b16 %v945
    %v1133 = vunpack.c.l.b16 %v946
    %v1134 = vunpack.c.h.b16 %v946
    %v1135 = vunpack.c.l.b16 %v947
    %v1136 = vunpack.c.h.b16 %v947
    %v1137 = vunpack.c.l.b16 %v948
    %v1138 = vunpack.c.h.b16 %v948
    %v1139 = vunpack.c.l.b16 %v949
    %v1140 = vunpack.c.h.b16 %v949
    %v1141 = vunpack.c.l.b16 %v950
    %v1142 = vunpack.c.h.b16 %v950
    %v1143 = vunpack.c.l.b16 %v951
    %v1144 = vunpack.c.h.b16 %v951
    %v1145 = vunpack.c.l.b16 %v952
    %v1146 = vunpack.c.h.b16 %v952
    %v1147 = vunpack.c.l.b16 %v953
    %v1148 = vunpack.c.h.b16 %v953
    %v1149 = vunpack.c.l.b16 %v954
    %v1150 = vunpack.c.h.b16 %v954
    %v1151 = vunpack.c.l.b16 %v955
    %v1152 = vunpack.c.h.b16 %v955
    %v1153 = vunpack.c.l.b16 %v956
    %v1154 = vunpack.c.h.b16 %v956
    %v1155 = vunpack.c.l.b16 %v957
    %v1156 = vunpack.c.h.b16 %v957
    %v1157 = vunpack.c.l.b16 %v958
    %v1158 = vunpack.c.h.b16 %v958
    %v1159 = vunpack.c.l.b16 %v959
    %v1160 = vunpack.c.h.b16 %v959
    %v1161 = vunpack.c.l.b16 %v960
    %v1162 = vunpack.c.h.b16 %v960
    %v1163 = vunpack.c.l.b16 %v961
    %v1164 = vunpack.c.h.b16 %v961
    %v1165 = vunpack.c.l.b16 %v962
    %v1166 = vunpack.c.h.b16 %v962
    %v1167 = vunpack.c.l.b16 %v963
    %v1168 = vunpack.c.h.b16 %v963
    %v1169 = vunpack.c.l.b16 %v964
    %v1170 = vunpack.c.h.b16 %v964
    %v1171 = vunpack.c.l.b16 %v965
    %v1172 = vunpack.c.h.b16 %v965
    %v1173 = vunpack.c.l.b16 %v966
    %v1174 = vunpack.c.h.b16 %v966
    %v1175 = vunpack.c.l.b16 %v967
    %v1176 = vunpack.c.h.b16 %v967
    %v1177 = vunpack.c.l.b16 %v968
    %v1178 = vunpack.c.h.b16 %v968
    %v1179 = vunpack.c.l.b16 %v969
    %v1180 = vunpack.c.h.b16 %v969
    %v1181 = vunpack.c.l.b16 %v970
    %v1182 = vunpack.c.h.b16 %v970
    %v1183 = vunpack.c.l.b16 %v971
    %v1184 = vunpack.c.h.b16 %v971
    %v1185 = vunpack.c.l.b16 %v972
    %v1186 = vunpack.c.h.b16 %v972
    %v1187 = vunpack.c.l.b16 %v973
    %v1188 = vunpack.c.h.b16 %v973
    %v1189 = vunpack.c.l.b16 %v974
    %v1190 = vunpack.c.h.b16 %v974
    %v1191 = vpack.c.b16 %v1067, %v1063
    %v1192 = vpack.c.b16 %v1068, %v1064
    %v1193 = vpack.c.b16 %v1069, %v1065
    %v1194 = vpack.c.b16 %v1070, %v1066
    %v1195 = vpack.c.b16 %v1075, %v1071
    %v1196 = vpack.c.b16 %v1076, %v1072
    %v1197 = vpack.c.b16 %v1077, %v1073
    %v1198 = vpack.c.b16 %v1078, %v1074
    %v1199 = vpack.c.b16 %v1083, %v1079
    %v1200 = vpack.c.b16 %v1084, %v1080
    %v1201 = vpack.c.b16 %v1085, %v1081
    %v1202 = vpack.c.b16 %v1086, %v1082
    %v1203 = vpack.c.b16 %v1091, %v1087
    %v1204 = vpack.c.b16 %v1092, %v1088
    %v1205 = vpack.c.b16 %v1093, %v1089
    %v1206 = vpack.c.b16 %v1094, %v1090
    %v1207 = vpack.c.b16 %v1099, %v1095
    %v1208 = vpack.c.b16 %v1100, %v1096
    %v1209 = vpack.c.b16 %v1101, %v1097
    %v1210 = vpack.c.b16 %v1102, %v1098
    %v1211 = vpack.c.b16 %v1107, %v1103
    %v1212 = vpack.c.b16 %v1108, %v1104
    %v1213 = vpack.c.b16 %v1109, %v1105
    %v1214 = vpack.c.b16 %v1110, %v1106
    %v1215 = vpack.c.b16 %v1115, %v1111
    %v1216 = vpack.c.b16 %v1116, %v1112
    %v1217 = vpack.c.b16 %v1117, %v1113
    %v1218 = vpack.c.b16 %v1118, %v1114
    %v1219 = vpack.c.b16 %v1123, %v1119
    %v1220 = vpack.c.b16 %v1124, %v1120
    %v1221 = vpack.c.b16 %v1125, %v1121
    %v1222 = vpack.c.b16 %v1126, %v1122
    %v1223 = vpack.c.b16 %v1131, %v1127
    %v1224 = vpack.c.b16 %v1132, %v1128
    %v1225 = vpack.c.b16 %v1133, %v1129
    %v1226 = vpack.c.b16 %v1134, %v1130
    %v1227 = vpack.c.b16 %v1139, %v1135
    %v1228 = vpack.c.b16 %v1140, %v1136
    %v1229 = vpack.c.b16 %v1141, %v1137
    %v1230 = vpack.c.b16 %v1142, %v1138
    %v1231 = vpack.c.b16 %v1147, %v1143
    %v1232 = vpack.c.b16 %v1148, %v1144
    %v1233 = vpack.c.b16 %v1149, %v1145
    %v1234 = vpack.c.b16 %v1150, %v1146
    %v1235 = vpack.c.b16 %v1155, %v1151
    %v1236 = vpack.c.b16 %v1156, %v1152
    %v1237 = vpack.c.b16 %v1157, %v1153
    %v1238 = vpack.c.b16 %v1158, %v1154
    %v1239 = vpack.c.b16 %v1163, %v1159
    %v1240 = vpack.c.b16 %v1164, %v1160
    %v1241 = vpack.c.b16 %v1165, %v1161
    %v1242 = vpack.c.b16 %v1166, %v1162
    %v1243 = vpack.c.b16 %v1171, %v1167
    %v1244 = vpack.c.b16 %v1172, %v1168
    %v1245 = vpack.c.b16 %v1173, %v1169
    %v1246 = vpack.c.b16 %v1174, %v1170
    %v1247 = vpack.c.b16 %v1179, %v1175
    %v1248 = vpack.c.b16 %v1180, %v1176
    %v1249 = vpack.c.b16 %v1181, %v1177
    %v1250 = vpack.c.b16 %v1182, %v1178
    %v1251 = vpack.c.b16 %v1187, %v1183
    %v1252 = vpack.c.b16 %v1188, %v1184
    %v1253 = vpack.c.b16 %v1189, %v1185
    %v1254 = vpack.c.b16 %v1190, %v1186
    %1319 = vmatprep.subr.bf16.mxu0 %v1192
    %1320 = vmatpush1.bf16.msra.mxu0 %v1191
    %1321 = vmatprep.subr.bf16.mxu0 %v1196
    %1322 = vmatpush1.bf16.msra.mxu0 %v1195
    %1323 = vmatprep.subr.bf16.mxu0 %v1200
    %1324 = vmatpush1.bf16.msra.mxu0 %v1199
    %1325 = vmatprep.subr.bf16.mxu0 %v1204
    %1326 = vmatpush1.bf16.msra.mxu0 %v1203
    %1327 = vmatprep.subr.bf16.mxu0 %v1208
    %1328 = vmatpush1.bf16.msra.mxu0 %v1207
    %1329 = vmatprep.subr.bf16.mxu0 %v1212
    %1330 = vmatpush1.bf16.msra.mxu0 %v1211
    %1331 = vmatprep.subr.bf16.mxu0 %v1216
    %1332 = vmatpush1.bf16.msra.mxu0 %v1215
    %1333 = vmatprep.subr.bf16.mxu0 %v1220
    %1334 = vmatpush1.bf16.msra.mxu0 %v1219
    %1335 = vmatprep.subr.bf16.mxu0 %v1224
    %1336 = vmatpush1.bf16.msra.mxu0 %v1223
    %1337 = vmatprep.subr.bf16.mxu0 %v1228
    %1338 = vmatpush1.bf16.msra.mxu0 %v1227
    %1339 = vmatprep.subr.bf16.mxu0 %v1232
    %1340 = vmatpush1.bf16.msra.mxu0 %v1231
    %1341 = vmatprep.subr.bf16.mxu0 %v1236
    %1342 = vmatpush1.bf16.msra.mxu0 %v1235
    %1343 = vmatprep.subr.bf16.mxu0 %v1240
    %1344 = vmatpush1.bf16.msra.mxu0 %v1239
    %1345 = vmatprep.subr.bf16.mxu0 %v1244
    %1346 = vmatpush1.bf16.msra.mxu0 %v1243
    %1347 = vmatprep.subr.bf16.mxu0 %v1248
    %1348 = vmatpush1.bf16.msra.mxu0 %v1247
    %1349 = vmatprep.subr.bf16.mxu0 %v1252
    %1350 = vmatpush1.bf16.msra.mxu0 %v1251
    %1351 = vmatprep.mubr.bf16.mxu0 %v976
    %1352 = vmatmul.mubr.bf16.gmra.mrb[0].mxu0 %v975
    %v1353 = vpop.f32.mrb[0].mxu0
    %v1354 = vadd.f32 %v982, %v1353
    %v1355 = vpop.f32.mrb[0].mxu0
    %v1356 = vadd.f32 %v986, %v1355
    %v1357 = vpop.f32.mrb[0].mxu0
    %v1358 = vpop.f32.mrb[0].mxu0
    %1359 = vdwg.mxu0
    %1360 = vmatprep.subr.bf16.mxu0 %v1194
    %1361 = vmatpush1.bf16.msra.mxu0 %v1193
    %1362 = vmatprep.subr.bf16.mxu0 %v1198
    %1363 = vmatpush1.bf16.msra.mxu0 %v1197
    %1364 = vmatprep.subr.bf16.mxu0 %v1202
    %1365 = vmatpush1.bf16.msra.mxu0 %v1201
    %1366 = vmatprep.subr.bf16.mxu0 %v1206
    %1367 = vmatpush1.bf16.msra.mxu0 %v1205
    %1368 = vmatprep.subr.bf16.mxu0 %v1210
    %1369 = vmatpush1.bf16.msra.mxu0 %v1209
    %1370 = vmatprep.subr.bf16.mxu0 %v1214
    %1371 = vmatpush1.bf16.msra.mxu0 %v1213
    %1372 = vmatprep.subr.bf16.mxu0 %v1218
    %1373 = vmatpush1.bf16.msra.mxu0 %v1217
    %1374 = vmatprep.subr.bf16.mxu0 %v1222
    %1375 = vmatpush1.bf16.msra.mxu0 %v1221
    %1376 = vmatprep.subr.bf16.mxu0 %v1226
    %1377 = vmatpush1.bf16.msra.mxu0 %v1225
    %1378 = vmatprep.subr.bf16.mxu0 %v1230
    %1379 = vmatpush1.bf16.msra.mxu0 %v1229
    %1380 = vmatprep.subr.bf16.mxu0 %v1234
    %1381 = vmatpush1.bf16.msra.mxu0 %v1233
    %1382 = vmatprep.subr.bf16.mxu0 %v1238
    %1383 = vmatpush1.bf16.msra.mxu0 %v1237
    %1384 = vmatprep.subr.bf16.mxu0 %v1242
    %1385 = vmatpush1.bf16.msra.mxu0 %v1241
    %1386 = vmatprep.subr.bf16.mxu0 %v1246
    %1387 = vmatpush1.bf16.msra.mxu0 %v1245
    %1388 = vmatprep.subr.bf16.mxu0 %v1250
    %1389 = vmatpush1.bf16.msra.mxu0 %v1249
    %1390 = vmatprep.subr.bf16.mxu0 %v1254
    %1391 = vmatpush1.bf16.msra.mxu0 %v1253
    %1392 = vmatprep.mubr.bf16.mxu0 %v976
    %1393 = vmatmul.mubr.bf16.gmra.mrb[0].mxu0 %v975
    %v1394 = vpop.f32.mrb[0].mxu0
    %v1395 = vadd.f32 %v990, %v1394
    %v1396 = vpop.f32.mrb[0].mxu0
    %v1397 = vadd.f32 %v994, %v1396
    %v1398 = vpop.f32.mrb[0].mxu0
    %v1399 = vpop.f32.mrb[0].mxu0
    %1400 = vdwg.mxu0
    %v1401 = vmax.f32 %v1354, 0.0
    %v1402 = vmax.f32 %v1356, 0.0
    %v1403 = vmax.f32 %v1395, 0.0
    %v1404 = vmax.f32 %v1397, 0.0
    %v1405 = vld [vmem:[#allocation10 + $0x200] sm:$0xff]
    %v1406 = vld [vmem:[#allocation10 + $0x208] sm:$0xff]
    %v1407 = vld [vmem:[#allocation10 + $0x210] sm:$0xff]
    %v1408 = vld [vmem:[#allocation10 + $0x218] sm:$0xff]
    %v1409 = vld [vmem:[#allocation10 + $0x220] sm:$0xff]
    %v1410 = vld [vmem:[#allocation10 + $0x228] sm:$0xff]
    %v1411 = vld [vmem:[#allocation10 + $0x230] sm:$0xff]
    %v1412 = vld [vmem:[#allocation10 + $0x238] sm:$0xff]
    %v1413 = vld [vmem:[#allocation10 + $0x240] sm:$0xff]
    %v1414 = vld [vmem:[#allocation10 + $0x248] sm:$0xff]
    %v1415 = vld [vmem:[#allocation10 + $0x250] sm:$0xff]
    %v1416 = vld [vmem:[#allocation10 + $0x258] sm:$0xff]
    %v1417 = vld [vmem:[#allocation10 + $0x260] sm:$0xff]
    %v1418 = vld [vmem:[#allocation10 + $0x268] sm:$0xff]
    %v1419 = vld [vmem:[#allocation10 + $0x270] sm:$0xff]
    %v1420 = vld [vmem:[#allocation10 + $0x278] sm:$0xff]
    %v1421 = vld [vmem:[#allocation10 + $0x280] sm:$0xff]
    %v1422 = vld [vmem:[#allocation10 + $0x288] sm:$0xff]
    %v1423 = vld [vmem:[#allocation10 + $0x290] sm:$0xff]
    %v1424 = vld [vmem:[#allocation10 + $0x298] sm:$0xff]
    %v1425 = vld [vmem:[#allocation10 + $0x2a0] sm:$0xff]
    %v1426 = vld [vmem:[#allocation10 + $0x2a8] sm:$0xff]
    %v1427 = vld [vmem:[#allocation10 + $0x2b0] sm:$0xff]
    %v1428 = vld [vmem:[#allocation10 + $0x2b8] sm:$0xff]
    %v1429 = vld [vmem:[#allocation10 + $0x2c0] sm:$0xff]
    %v1430 = vld [vmem:[#allocation10 + $0x2c8] sm:$0xff]
    %v1431 = vld [vmem:[#allocation10 + $0x2d0] sm:$0xff]
    %v1432 = vld [vmem:[#allocation10 + $0x2d8] sm:$0xff]
    %v1433 = vld [vmem:[#allocation10 + $0x2e0] sm:$0xff]
    %v1434 = vld [vmem:[#allocation10 + $0x2e8] sm:$0xff]
    %v1435 = vld [vmem:[#allocation10 + $0x2f0] sm:$0xff]
    %v1436 = vld [vmem:[#allocation10 + $0x2f8] sm:$0xff]
    %v1437 = vpack.c.bf16 %v1401, %v1401
    %v1438 = vpack.c.bf16 %v1402, %v1402
    %v1439 = vpack.c.bf16 %v1403, %v1403
    %v1440 = vpack.c.bf16 %v1404, %v1404
    %v1441 = vld [vmem:[%s3 + $0x6] sm:$0x1]
    %v1443 = vlaneseq
    %v1444 = vshrl.u32 %v1443, 7
    %v1445 = vsub.s32 0, %v1444
    %v1446 = vrot.slane %v1441, %v1445
    %v1480 = vunpack.c.l.b16 %v1405
    %v1481 = vunpack.c.h.b16 %v1405
    %v1482 = vunpack.c.l.b16 %v1406
    %v1483 = vunpack.c.h.b16 %v1406
    %v1484 = vunpack.c.l.b16 %v1407
    %v1485 = vunpack.c.h.b16 %v1407
    %v1486 = vunpack.c.l.b16 %v1408
    %v1487 = vunpack.c.h.b16 %v1408
    %v1488 = vunpack.c.l.b16 %v1409
    %v1489 = vunpack.c.h.b16 %v1409
    %v1490 = vunpack.c.l.b16 %v1410
    %v1491 = vunpack.c.h.b16 %v1410
    %v1492 = vunpack.c.l.b16 %v1411
    %v1493 = vunpack.c.h.b16 %v1411
    %v1494 = vunpack.c.l.b16 %v1412
    %v1495 = vunpack.c.h.b16 %v1412
    %v1496 = vunpack.c.l.b16 %v1413
    %v1497 = vunpack.c.h.b16 %v1413
    %v1498 = vunpack.c.l.b16 %v1414
    %v1499 = vunpack.c.h.b16 %v1414
    %v1500 = vunpack.c.l.b16 %v1415
    %v1501 = vunpack.c.h.b16 %v1415
    %v1502 = vunpack.c.l.b16 %v1416
    %v1503 = vunpack.c.h.b16 %v1416
    %v1504 = vunpack.c.l.b16 %v1417
    %v1505 = vunpack.c.h.b16 %v1417
    %v1506 = vunpack.c.l.b16 %v1418
    %v1507 = vunpack.c.h.b16 %v1418
    %v1508 = vunpack.c.l.b16 %v1419
    %v1509 = vunpack.c.h.b16 %v1419
    %v1510 = vunpack.c.l.b16 %v1420
    %v1511 = vunpack.c.h.b16 %v1420
    %v1512 = vunpack.c.l.b16 %v1421
    %v1513 = vunpack.c.h.b16 %v1421
    %v1514 = vunpack.c.l.b16 %v1422
    %v1515 = vunpack.c.h.b16 %v1422
    %v1516 = vunpack.c.l.b16 %v1423
    %v1517 = vunpack.c.h.b16 %v1423
    %v1518 = vunpack.c.l.b16 %v1424
    %v1519 = vunpack.c.h.b16 %v1424
    %v1520 = vunpack.c.l.b16 %v1425
    %v1521 = vunpack.c.h.b16 %v1425
    %v1522 = vunpack.c.l.b16 %v1426
    %v1523 = vunpack.c.h.b16 %v1426
    %v1524 = vunpack.c.l.b16 %v1427
    %v1525 = vunpack.c.h.b16 %v1427
    %v1526 = vunpack.c.l.b16 %v1428
    %v1527 = vunpack.c.h.b16 %v1428
    %v1528 = vunpack.c.l.b16 %v1429
    %v1529 = vunpack.c.h.b16 %v1429
    %v1530 = vunpack.c.l.b16 %v1430
    %v1531 = vunpack.c.h.b16 %v1430
    %v1532 = vunpack.c.l.b16 %v1431
    %v1533 = vunpack.c.h.b16 %v1431
    %v1534 = vunpack.c.l.b16 %v1432
    %v1535 = vunpack.c.h.b16 %v1432
    %v1536 = vunpack.c.l.b16 %v1433
    %v1537 = vunpack.c.h.b16 %v1433
    %v1538 = vunpack.c.l.b16 %v1434
    %v1539 = vunpack.c.h.b16 %v1434
    %v1540 = vunpack.c.l.b16 %v1435
    %v1541 = vunpack.c.h.b16 %v1435
    %v1542 = vunpack.c.l.b16 %v1436
    %v1543 = vunpack.c.h.b16 %v1436
    %v1544 = vpack.c.b16 %v1484, %v1480
    %v1545 = vpack.c.b16 %v1485, %v1481
    %v1546 = vpack.c.b16 %v1486, %v1482
    %v1547 = vpack.c.b16 %v1487, %v1483
    %v1548 = vpack.c.b16 %v1492, %v1488
    %v1549 = vpack.c.b16 %v1493, %v1489
    %v1550 = vpack.c.b16 %v1494, %v1490
    %v1551 = vpack.c.b16 %v1495, %v1491
    %v1552 = vpack.c.b16 %v1500, %v1496
    %v1553 = vpack.c.b16 %v1501, %v1497
    %v1554 = vpack.c.b16 %v1502, %v1498
    %v1555 = vpack.c.b16 %v1503, %v1499
    %v1556 = vpack.c.b16 %v1508, %v1504
    %v1557 = vpack.c.b16 %v1509, %v1505
    %v1558 = vpack.c.b16 %v1510, %v1506
    %v1559 = vpack.c.b16 %v1511, %v1507
    %v1560 = vpack.c.b16 %v1516, %v1512
    %v1561 = vpack.c.b16 %v1517, %v1513
    %v1562 = vpack.c.b16 %v1518, %v1514
    %v1563 = vpack.c.b16 %v1519, %v1515
    %v1564 = vpack.c.b16 %v1524, %v1520
    %v1565 = vpack.c.b16 %v1525, %v1521
    %v1566 = vpack.c.b16 %v1526, %v1522
    %v1567 = vpack.c.b16 %v1527, %v1523
    %v1568 = vpack.c.b16 %v1532, %v1528
    %v1569 = vpack.c.b16 %v1533, %v1529
    %v1570 = vpack.c.b16 %v1534, %v1530
    %v1571 = vpack.c.b16 %v1535, %v1531
    %v1572 = vpack.c.b16 %v1540, %v1536
    %v1573 = vpack.c.b16 %v1541, %v1537
    %v1574 = vpack.c.b16 %v1542, %v1538
    %v1575 = vpack.c.b16 %v1543, %v1539
    %1608 = vmatprep.subr.bf16.mxu0 %v1545
    %1609 = vmatpush1.bf16.xpose.msra.mxu0 %v1544
    %1610 = vmatprep.subr.bf16.mxu0 %v1549
    %1611 = vmatpush1.bf16.xpose.msra.mxu0 %v1548
    %1612 = vmatprep.subr.bf16.mxu0 %v1553
    %1613 = vmatpush1.bf16.xpose.msra.mxu0 %v1552
    %1614 = vmatprep.subr.bf16.mxu0 %v1557
    %1615 = vmatpush1.bf16.xpose.msra.mxu0 %v1556
    %1616 = vmatprep.subr.bf16.mxu0 %v1561
    %1617 = vmatpush1.bf16.xpose.msra.mxu0 %v1560
    %1618 = vmatprep.subr.bf16.mxu0 %v1565
    %1619 = vmatpush1.bf16.xpose.msra.mxu0 %v1564
    %1620 = vmatprep.subr.bf16.mxu0 %v1569
    %1621 = vmatpush1.bf16.xpose.msra.mxu0 %v1568
    %1622 = vmatprep.subr.bf16.mxu0 %v1573
    %1623 = vmatpush1.bf16.xpose.msra.mxu0 %v1572
    %1624 = vmatprep.subr.bf16.mxu0 0
    %1625 = vmatpush1.bf16.xpose.msra.mxu0 0
    %1626 = vmatprep.subr.bf16.mxu0 0
    %1627 = vmatpush1.bf16.xpose.msra.mxu0 0
    %1628 = vmatprep.subr.bf16.mxu0 0
    %1629 = vmatpush1.bf16.xpose.msra.mxu0 0
    %1630 = vmatprep.subr.bf16.mxu0 0
    %1631 = vmatpush1.bf16.xpose.msra.mxu0 0
    %1632 = vmatprep.subr.bf16.mxu0 0
    %1633 = vmatpush1.bf16.xpose.msra.mxu0 0
    %1634 = vmatprep.subr.bf16.mxu0 0
    %1635 = vmatpush1.bf16.xpose.msra.mxu0 0
    %1636 = vmatprep.subr.bf16.mxu0 0
    %1637 = vmatpush1.bf16.xpose.msra.mxu0 0
    %1638 = vmatprep.subr.bf16.mxu0 0
    %1639 = vmatpush1.bf16.xpose.msra.mxu0 0
    %1640 = vmatprep.mubr.bf16.mxu0 %v1438
    %1641 = vmatmul.mubr.bf16.gmra.mrb[0].mxu0 %v1437
    %v1642 = vpop.f32.mrb[0].mxu0
    %v1643 = vadd.f32 %v1446, %v1642
    %v1644 = vpop.f32.mrb[0].mxu0
    %v1645 = vpop.f32.mrb[0].mxu0
    %v1646 = vpop.f32.mrb[0].mxu0
    %1647 = vdwg.mxu0
    %1648 = vmatprep.subr.bf16.mxu0 %v1547
    %1649 = vmatpush1.bf16.xpose.msra.mxu0 %v1546
    %1650 = vmatprep.subr.bf16.mxu0 %v1551
    %1651 = vmatpush1.bf16.xpose.msra.mxu0 %v1550
    %1652 = vmatprep.subr.bf16.mxu0 %v1555
    %1653 = vmatpush1.bf16.xpose.msra.mxu0 %v1554
    %1654 = vmatprep.subr.bf16.mxu0 %v1559
    %1655 = vmatpush1.bf16.xpose.msra.mxu0 %v1558
    %1656 = vmatprep.subr.bf16.mxu0 %v1563
    %1657 = vmatpush1.bf16.xpose.msra.mxu0 %v1562
    %1658 = vmatprep.subr.bf16.mxu0 %v1567
    %1659 = vmatpush1.bf16.xpose.msra.mxu0 %v1566
    %1660 = vmatprep.subr.bf16.mxu0 %v1571
    %1661 = vmatpush1.bf16.xpose.msra.mxu0 %v1570
    %1662 = vmatprep.subr.bf16.mxu0 %v1575
    %1663 = vmatpush1.bf16.xpose.msra.mxu0 %v1574
    %1664 = vmatprep.subr.bf16.mxu0 0
    %1665 = vmatpush1.bf16.xpose.msra.mxu0 0
    %1666 = vmatprep.subr.bf16.mxu0 0
    %1667 = vmatpush1.bf16.xpose.msra.mxu0 0
    %1668 = vmatprep.subr.bf16.mxu0 0
    %1669 = vmatpush1.bf16.xpose.msra.mxu0 0
    %1670 = vmatprep.subr.bf16.mxu0 0
    %1671 = vmatpush1.bf16.xpose.msra.mxu0 0
    %1672 = vmatprep.subr.bf16.mxu0 0
    %1673 = vmatpush1.bf16.xpose.msra.mxu0 0
    %1674 = vmatprep.subr.bf16.mxu0 0
    %1675 = vmatpush1.bf16.xpose.msra.mxu0 0
    %1676 = vmatprep.subr.bf16.mxu0 0
    %1677 = vmatpush1.bf16.xpose.msra.mxu0 0
    %1678 = vmatprep.subr.bf16.mxu0 0
    %1679 = vmatpush1.bf16.xpose.msra.mxu0 0
    %1680 = vmatprep.mubr.bf16.mxu0 %v1440
    %1681 = vmatmul.mubr.bf16.gmra.mrb[0].mxu0 %v1439
    %v1682 = vpop.f32.mrb[0].mxu0
    %v1683 = vadd.f32 %v1643, %v1682
    %v1684 = vpop.f32.mrb[0].mxu0
    %v1685 = vpop.f32.mrb[0].mxu0
    %v1686 = vpop.f32.mrb[0].mxu0
    %1687 = vdwg.mxu0
    %v1688 = vand.u32 2147483647, %v1683
    %v1689 = vsub.f32 0.0, %v1688
    %v1690 = vmul.f32 %v1689, 1.442695
    %v1691 = vpow.pop %v1690
    %vm1692 = vcmp.ge.f32.partialorder %v1683, 0.0
    %v1693 = vadd.f32 %v1691, 1.0
    %v1694 = vrcp.pop %v1693
    %v1695 = vmul.f32 1.0, %v1694
    %v1696 = vmul.f32 %v1691, %v1694
    %v1697 = vsel %vm1692, %v1695, %v1696
    %1698 = vst [vmem:[#allocation11] sm:$0x3] %v1697
    // Predicated region
    $region30: #{cnn_forward.1} parent=1 // pred_check
      _
    $region31: #{cnn_forward.1} parent=1 // pred_check_branch
      %1700 = sbr.rel (0) target = $region33
    $region32: #{cnn_forward.1} parent=1 // pred_region
      %s1702 = ssub.s32 32, 32
      %1703 = vsyncadd [#allocation7], %s1702
      %s1705 = sshll.u32 [#allocation11], 4
      %s1706 = int_to_ptr.vmem [resolvable:$true] %s1705
      %1708 = dma.vmem_to_hbm [thread:$0]  %s1706, 32, %s4, [#allocation7]
    $region33: #{cnn_forward.1} parent=1 // pred_fallthru
      _
    // Predicated region
    $region34: #{cnn_forward.1} parent=1 // pred_check
      _
    $region35: #{cnn_forward.1} parent=1 // pred_check_branch
      %1710 = sbr.rel (0) target = $region37
    $region36: #{cnn_forward.1} parent=1 // pred_region
      %1711 = dma.done [#allocation7], 32
    $region37: #{cnn_forward.1} parent=1 // pred_fallthru
      _
    %1712 = vsyncpa [#allocation6], 1
    %1713 = vsyncpa [#allocation9], 1
    %1714 = vsyncpa [#allocation7], 1

</llo_original>
